<compile_context>
chip_gen: v6e
topology: v6e:2x2x1
jax: 0.10.0
libtpu: 0.0.40
codegen_flags: <defaults>
</compile_context>

<pallas_src>
import jax
import jax.numpy as jnp
from jax.experimental import pallas as pl
from jax.experimental.pallas import tpu as pltpu


# ----------------------------------------------------------------------------
# Wrapper: slab packing + single fused pallas_call + output unpack
# ----------------------------------------------------------------------------
def temporal_gnn_forward(x, a_hat, pool, cov, h0, c0, gcn_params, lstm_params,
                         in_channels):
    f32 = jnp.float32
    T = 3
    N = x.shape[0]
    B, H = h0.shape
    Cin = in_channels
    nclass = lstm_params["b2"].shape[1]
    ncov = cov.shape[1]
    LANES = 4 * H
    assert LANES == 128, "param packing assumes hidden=32 (4H = 128 lanes)"
    assert Cin <= H and ncov <= H and nclass <= H
    OUT_W = 128
    assert T + nclass <= OUT_W
    TN, TB = T * N, T * B

    # ---- (1) node features: stack the T temporal slices along rows ----
    x_stack = jnp.concatenate([x[:, t * Cin:(t + 1) * Cin] for t in range(T)],
                              axis=0)                           # [TN, Cin]

    # ---- (2) graph slab: block-diag A_hat, PA = pool_blk @ A_blk, pool_blk ----
    eye_t = jnp.eye(T, dtype=f32)
    a_blk = jnp.kron(eye_t, a_hat)                              # [TN, TN]
    pool_blk = jnp.kron(eye_t, pool)                            # [TB, TN]
    pa = pool_blk @ a_blk                                       # [TB, TN]
    g_slab = jnp.concatenate([a_blk, pa, pool_blk], axis=0)     # [TN+2TB, TN]

    # ---- (3) parameter slab [3H + 16, 4H] — every weight/bias in one array ----
    wih_all = jnp.concatenate([lstm_params["wih"][g] for g in range(4)], axis=1)
    whh_all = jnp.concatenate([lstm_params["whh"][g] for g in range(4)], axis=1)
    b_gates = jnp.concatenate([lstm_params["bg"][g] for g in range(4)], axis=1)

    blk0 = jnp.zeros((H, LANES), f32)                           # [W1|W2|W0|W1h]
    blk0 = blk0.at[:, 0:H].set(gcn_params["w1"])
    blk0 = blk0.at[:, H:2 * H].set(gcn_params["w2"])
    blk0 = blk0.at[:, 2 * H:3 * H].set(lstm_params["w0"])
    blk0 = blk0.at[:, 3 * H:3 * H + 8].set(lstm_params["w1"])

    RW_LIN = 4
    RW_HEAD = RW_LIN + Cin
    NR3 = RW_HEAD + max(8, ncov)
    blk3 = jnp.zeros((NR3, LANES), f32)                         # biases + small mats
    blk3 = blk3.at[0, 0:H].set(gcn_params["b_lin"][0])
    blk3 = blk3.at[0, H:2 * H].set(gcn_params["b1"][0])
    blk3 = blk3.at[0, 2 * H:3 * H].set(gcn_params["b2"][0])
    blk3 = blk3.at[0, 3 * H:4 * H].set(lstm_params["b0"][0])
    blk3 = blk3.at[1, :].set(b_gates[0])                        # b_ih + b_hh
    blk3 = blk3.at[2, 0:H].set(lstm_params["war"][0])
    blk3 = blk3.at[2, H:2 * H].set(lstm_params["wah"][0])
    blk3 = blk3.at[2, 2 * H:2 * H + 8].set(lstm_params["b1"][0])
    blk3 = blk3.at[2, 2 * H + 8:2 * H + 8 + nclass].set(lstm_params["b2"][0])
    blk3 = blk3.at[2, 2 * H + 8 + nclass].set(lstm_params["ba"][0, 0])
    blk3 = blk3.at[RW_LIN:RW_LIN + Cin, 0:H].set(gcn_params["w_lin"])
    blk3 = blk3.at[RW_HEAD:RW_HEAD + 8, 0:nclass].set(lstm_params["w2a"])
    blk3 = blk3.at[RW_HEAD:RW_HEAD + ncov, H:H + nclass].set(lstm_params["w2b"])

    p_slab = jnp.concatenate([blk0, wih_all, whh_all, blk3], axis=0)  # [3H+NR3,4H]
    R3 = 3 * H

    # ---- (4) state slab: h0 | c0 | cov (lane-padded to H) ----
    cov_pad = jnp.zeros((B, H), f32).at[:, 0:ncov].set(cov)
    st_slab = jnp.concatenate([h0, c0, cov_pad], axis=0)        # [3B, H]

    # ------------------------------------------------------------------------
    # Fused kernel (closure over the static sizes / packing offsets)
    # ------------------------------------------------------------------------
    def kernel(x_ref, g_ref, p_ref, st_ref, out_ref):
        def mxdot(lhs, rhs):
            # bf16 operands, f32 accumulation: single MXU pass per tile.
            return jnp.dot(lhs.astype(jnp.bfloat16), rhs.astype(jnp.bfloat16),
                           preferred_element_type=f32)

        # -- unpack slabs (static slices of VMEM-resident values, no extra DMA) --
        xs = x_ref[...]                                   # [TN, Cin]
        gv = g_ref[...]                                   # [TN+2TB, TN]
        a_k = gv[0:TN, :]
        pa_k = gv[TN:TN + TB, :]
        pool_k = gv[TN + TB:TN + 2 * TB, :]

        wblk = p_ref[0:H, :]
        w1 = wblk[:, 0:H]
        w2 = wblk[:, H:2 * H]
        w0 = wblk[:, 2 * H:3 * H]
        w1h = wblk[:, 3 * H:3 * H + 8]
        wih = p_ref[H:2 * H, :]                           # [H, 4H]
        whh = p_ref[2 * H:3 * H, :]                       # [H, 4H]
        small = p_ref[R3:R3 + NR3, :]
        blin = small[0:1, 0:H]
        b1 = small[0:1, H:2 * H]
        b2 = small[0:1, 2 * H:3 * H]
        b0 = small[0:1, 3 * H:4 * H]
        bg = small[1:2, :]
        war = small[2:3, 0:H]
        wah = small[2:3, H:2 * H]
        b1h = small[2:3, 2 * H:2 * H + 8]
        b2h = small[2:3, 2 * H + 8:2 * H + 8 + nclass]
        ba = small[2:3, 2 * H + 8 + nclass:2 * H + 9 + nclass]
        wlin = small[RW_LIN:RW_LIN + Cin, 0:H]
        w2a = small[RW_HEAD:RW_HEAD + 8, 0:nclass]
        w2b = small[RW_HEAD:RW_HEAD + ncov, H:H + nclass]

        stv = st_ref[...]
        h_st = stv[0:B, :]
        c_st = stv[B:2 * B, :]
        cov_k = stv[2 * B:3 * B, 0:ncov]

        # -- GCN encoder: all T slices batched along rows (block-diag A) --
        h = mxdot(xs, wlin) + blin                                    # lin
        out1 = jnp.maximum(mxdot(a_k, mxdot(h, w1)) + b1, 0.0) + h    # conv1+relu+res
        # conv2 + residual + global mean pool, with the pool folded in:
        #   pooled = pool @ (A@(out1 W2) + b2 + out1)
        pooled = mxdot(pa_k, mxdot(out1, w2)) + mxdot(pool_k, out1) + b2   # [TB, H]

        # -- LSTM: input half of the gates hoisted out of the recurrence --
        x_part = mxdot(pooled, wih) + bg                              # [TB, 4H]
        rnn_list = []
        for t in range(T):
            gates = x_part[t * B:(t + 1) * B, :] + mxdot(h_st, whh)   # [B, 4H]
            i_g = jax.nn.sigmoid(gates[:, 0:H])
            f_g = jax.nn.sigmoid(gates[:, H:2 * H])
            g_g = jnp.tanh(gates[:, 2 * H:3 * H])
            o_g = jax.nn.sigmoid(gates[:, 3 * H:4 * H])
            c_st = f_g * c_st + i_g * g_g
            h_st = o_g * jnp.tanh(c_st)
            rnn_list.append(h_st)
        h_n = h_st                                        # raw LSTM last hidden

        # -- w0 + tanh + attention logits, batched over all T*B rows --
        rnn_stack = jnp.concatenate(rnn_list, axis=0)                 # [TB, H]
        r_all = jnp.tanh(mxdot(rnn_stack, w0) + b0)                   # [TB, H]
        hn_term = jnp.sum(h_n * wah, axis=-1, keepdims=True) + ba     # [B, 1]
        r_dot = jnp.sum(r_all * war, axis=-1, keepdims=True)          # [TB, 1]
        logits_att = jnp.concatenate(
            [r_dot[t * B:(t + 1) * B, :] for t in range(T)], axis=1) + hn_term

        m = jnp.max(logits_att, axis=1, keepdims=True)
        e = jnp.exp(logits_att - m)
        attn = e / jnp.sum(e, axis=1, keepdims=True)                  # [B, T]

        # -- attention-weighted context --
        ctx = attn[:, 0:1] * r_all[0:B, :]
        for t in range(1, T):
            ctx = ctx + attn[:, t:t + 1] * r_all[t * B:(t + 1) * B, :]

        # -- head: linear1+relu, concat(cov) as split matmul, linear2 (f32) --
        z = jnp.maximum(jnp.dot(ctx, w1h, preferred_element_type=f32) + b1h, 0.0)
        head = (jnp.dot(z, w2a, preferred_element_type=f32)
                + jnp.dot(cov_k, w2b, preferred_element_type=f32) + b2h)

        # -- pack [attn | head | zero-pad] into one lane-dense output, 1 store --
        out_ref[...] = jnp.concatenate(
            [attn, head, jnp.zeros((B, OUT_W - T - nclass), f32)], axis=1)

    # ------------------------------------------------------------------------
    flops = 2 * (TN * Cin * H + TN * H * H + TN * TN * H          # lin, hW1, A@
                 + TN * H * H + 2 * TB * TN * H                   # out1W2, PA@, pool@
                 + TB * H * 4 * H + T * B * H * 4 * H             # LSTM gates
                 + TB * H * H                                     # w0
                 + B * H * 8 + B * 8 * nclass + B * ncov * nclass)
    trans = TB * 5 * H + TB * H + B * T
    bytes_acc = 4 * (x_stack.size + g_slab.size + p_slab.size + st_slab.size
                     + B * OUT_W)

    def full(shape):
        nd = len(shape)
        return pl.BlockSpec(shape, lambda i, _n=nd: (0,) * _n)

    packed = pl.pallas_call(
        kernel,
        out_shape=jax.ShapeDtypeStruct((B, OUT_W), f32),
        grid=(1,),
        in_specs=[full(x_stack.shape), full(g_slab.shape),
                  full(p_slab.shape), full(st_slab.shape)],
        out_specs=full((B, OUT_W)),
        compiler_params=pltpu.CompilerParams(
            dimension_semantics=("arbitrary",),
            vmem_limit_bytes=32 * 1024 * 1024),
        cost_estimate=pl.CostEstimate(flops=int(flops),
                                      transcendentals=int(trans),
                                      bytes_accessed=int(bytes_acc)),
    )(x_stack, g_slab, p_slab, st_slab)

    attn = packed[:, :T]
    logits = packed[:, T:T + nclass]
    return attn, logits


# ----------------------------------------------------------------------------
# Parameter init + graph preprocessing glue (plain JAX)
# ----------------------------------------------------------------------------
def init_params(key, in_channels, hidden, nclass, ncov):
    ks = jax.random.split(key, 20)
    s = 0.1
    gcn = {
        "w_lin": s * jax.random.normal(ks[0], (in_channels, hidden), jnp.float32),
        "b_lin": s * jax.random.normal(ks[1], (1, hidden), jnp.float32),
        "w1":    s * jax.random.normal(ks[2], (hidden, hidden), jnp.float32),
        "b1":    s * jax.random.normal(ks[3], (1, hidden), jnp.float32),
        "w2":    s * jax.random.normal(ks[4], (hidden, hidden), jnp.float32),
        "b2":    s * jax.random.normal(ks[5], (1, hidden), jnp.float32),
    }
    lstm = {
        # wih/whh: per-gate [H_in, H_out]; bg corresponds to b_ih + b_hh
        "wih": s * jax.random.normal(ks[6], (4, hidden, hidden), jnp.float32),
        "whh": s * jax.random.normal(ks[7], (4, hidden, hidden), jnp.float32),
        "bg":  s * jax.random.normal(ks[8], (4, 1, hidden), jnp.float32),
        "w0":  s * jax.random.normal(ks[9], (hidden, hidden), jnp.float32),
        "b0":  s * jax.random.normal(ks[10], (1, hidden), jnp.float32),
        # attn_fc.weight [1, 2H] split: war = w[:, :H], wah = w[:, H:]
        "war": s * jax.random.normal(ks[11], (1, hidden), jnp.float32),
        "wah": s * jax.random.normal(ks[12], (1, hidden), jnp.float32),
        "ba":  s * jax.random.normal(ks[13], (1, 1), jnp.float32),
        "w1":  s * jax.random.normal(ks[14], (hidden, 8), jnp.float32),
        "b1":  s * jax.random.normal(ks[15], (1, 8), jnp.float32),
        "w2a": s * jax.random.normal(ks[16], (8, nclass), jnp.float32),
        "w2b": s * jax.random.normal(ks[17], (ncov, nclass), jnp.float32),
        "b2":  s * jax.random.normal(ks[18], (1, nclass), jnp.float32),
    }
    return gcn, lstm


def build_graph(n_graphs, nodes_per_graph):
    """Ring graph within each subgraph; dense normalized adjacency
    (GCNConv improved=True: A_hat = D^-1/2 (A + 2I) D^-1/2), batch vector and
    mean-pool matrix."""
    n = n_graphs * nodes_per_graph
    A = jnp.zeros((n, n), jnp.float32)
    for g in range(n_graphs):
        for k in range(nodes_per_graph):
            i = g * nodes_per_graph + k
            j = g * nodes_per_graph + (k + 1) % nodes_per_graph
            A = A.at[i, j].set(1.0)
            A = A.at[j, i].set(1.0)
    A_tilde = A + 2.0 * jnp.eye(n, dtype=jnp.float32)     # improved=True self loops
    deg = jnp.sum(A_tilde, axis=1)
    dinv = 1.0 / jnp.sqrt(deg)
    a_hat = dinv[:, None] * A_tilde * dinv[None, :]
    batch = jnp.repeat(jnp.arange(n_graphs, dtype=jnp.int32), nodes_per_graph)
    onehot = (batch[None, :] == jnp.arange(n_graphs)[:, None]).astype(jnp.float32)
    pool = onehot / jnp.sum(onehot, axis=1, keepdims=True)
    return a_hat, batch, pool


if __name__ == "__main__":
    key = jax.random.PRNGKey(0)
    k_x, k_cov, k_h, k_c, k_p = jax.random.split(key, 5)

    in_channels = 4
    hidden = 32
    nclass = 3
    ncov = 4
    n_graphs = 2          # batch of graphs
    nodes_per_graph = 8
    n_nodes = n_graphs * nodes_per_graph

    x = jax.random.normal(k_x, (n_nodes, 3 * in_channels), jnp.float32)
    cov = jax.random.normal(k_cov, (n_graphs, ncov), jnp.float32)
    # LSTMAttention.init_hidden uses torch.randn -> deterministic random here
    h0 = jax.random.normal(k_h, (n_graphs, hidden), jnp.float32)
    c0 = jax.random.normal(k_c, (n_graphs, hidden), jnp.float32)

    a_hat, batch, pool = build_graph(n_graphs, nodes_per_graph)
    gcn_params, lstm_params = init_params(k_p, in_channels, hidden, nclass, ncov)

    attn, logits = temporal_gnn_forward(x, a_hat, pool, cov, h0, c0,
                                        gcn_params, lstm_params, in_channels)
    jax.block_until_ready((attn, logits))

    assert attn.shape == (n_graphs, 3)
    assert logits.shape == (n_graphs, nclass)
    assert bool(jnp.all(jnp.isfinite(attn))) and bool(jnp.all(jnp.isfinite(logits)))
    # attention weights must sum to 1 over the T axis
    assert bool(jnp.allclose(jnp.sum(attn, axis=1), 1.0, atol=1e-5))
    print("KERNEL_OK")
</pallas_src>

<mosaic_0001>
module attributes {stable_mosaic.version = 11 : i64} {
  func.func @kernel(%arg0: i32, %arg1: memref<48x4xf32, #tpu.memory_space<vmem>>, %arg2: memref<60x48xf32, #tpu.memory_space<vmem>>, %arg3: memref<112x128xf32, #tpu.memory_space<vmem>>, %arg4: memref<6x32xf32, #tpu.memory_space<vmem>>, %arg5: memref<2x128xf32, #tpu.memory_space<vmem>>) attributes {dimension_semantics = [#tpu.dimension_semantics<arbitrary>], iteration_bounds = array<i64: 1>, scalar_prefetch = 0 : i64, scratch_operands = 0 : i64, tpu.core_type = #tpu.core_type<tc>, window_params = [{pipeline_mode = #tpu.pipeline_mode<synchronous>, transform_indices = @transform_0, window_bounds = array<i64: 48, 4>}, {pipeline_mode = #tpu.pipeline_mode<synchronous>, transform_indices = @transform_1, window_bounds = array<i64: 60, 48>}, {pipeline_mode = #tpu.pipeline_mode<synchronous>, transform_indices = @transform_2, window_bounds = array<i64: 112, 128>}, {pipeline_mode = #tpu.pipeline_mode<synchronous>, transform_indices = @transform_3, window_bounds = array<i64: 6, 32>}, {pipeline_mode = #tpu.pipeline_mode<synchronous>, transform_indices = @transform_4, window_bounds = array<i64: 2, 128>}]} {
    %c0 = arith.constant 0 : index
    %c0_0 = arith.constant 0 : index
    %0 = vector.load %arg1[%c0, %c0_0] : memref<48x4xf32, #tpu.memory_space<vmem>>, vector<48x4xf32>
    %c0_1 = arith.constant 0 : index
    %c0_2 = arith.constant 0 : index
    %1 = vector.load %arg2[%c0_1, %c0_2] : memref<60x48xf32, #tpu.memory_space<vmem>>, vector<60x48xf32>
    %2 = vector.extract_strided_slice %1 {offsets = [0, 0], sizes = [48, 48], strides = [1, 1]} : vector<60x48xf32> to vector<48x48xf32>
    %3 = vector.extract_strided_slice %1 {offsets = [48, 0], sizes = [6, 48], strides = [1, 1]} : vector<60x48xf32> to vector<6x48xf32>
    %4 = vector.extract_strided_slice %1 {offsets = [54, 0], sizes = [6, 48], strides = [1, 1]} : vector<60x48xf32> to vector<6x48xf32>
    %c0_3 = arith.constant 0 : index
    %c0_4 = arith.constant 0 : index
    %5 = vector.load %arg3[%c0_3, %c0_4] : memref<112x128xf32, #tpu.memory_space<vmem>>, vector<32x128xf32>
    %6 = vector.extract_strided_slice %5 {offsets = [0, 0], sizes = [32, 32], strides = [1, 1]} : vector<32x128xf32> to vector<32x32xf32>
    %7 = vector.extract_strided_slice %5 {offsets = [0, 32], sizes = [32, 32], strides = [1, 1]} : vector<32x128xf32> to vector<32x32xf32>
    %8 = vector.extract_strided_slice %5 {offsets = [0, 64], sizes = [32, 32], strides = [1, 1]} : vector<32x128xf32> to vector<32x32xf32>
    %9 = vector.extract_strided_slice %5 {offsets = [0, 96], sizes = [32, 8], strides = [1, 1]} : vector<32x128xf32> to vector<32x8xf32>
    %c32 = arith.constant 32 : index
    %c0_5 = arith.constant 0 : index
    %10 = vector.load %arg3[%c32, %c0_5] : memref<112x128xf32, #tpu.memory_space<vmem>>, vector<32x128xf32>
    %c64 = arith.constant 64 : index
    %c0_6 = arith.constant 0 : index
    %11 = vector.load %arg3[%c64, %c0_6] : memref<112x128xf32, #tpu.memory_space<vmem>>, vector<32x128xf32>
    %c96 = arith.constant 96 : index
    %c0_7 = arith.constant 0 : index
    %12 = vector.load %arg3[%c96, %c0_7] : memref<112x128xf32, #tpu.memory_space<vmem>>, vector<16x128xf32>
    %13 = vector.extract_strided_slice %12 {offsets = [0, 0], sizes = [1, 32], strides = [1, 1]} : vector<16x128xf32> to vector<1x32xf32>
    %14 = vector.extract_strided_slice %12 {offsets = [0, 32], sizes = [1, 32], strides = [1, 1]} : vector<16x128xf32> to vector<1x32xf32>
    %15 = vector.extract_strided_slice %12 {offsets = [0, 64], sizes = [1, 32], strides = [1, 1]} : vector<16x128xf32> to vector<1x32xf32>
    %16 = vector.extract_strided_slice %12 {offsets = [0, 96], sizes = [1, 32], strides = [1, 1]} : vector<16x128xf32> to vector<1x32xf32>
    %17 = vector.extract_strided_slice %12 {offsets = [1, 0], sizes = [1, 128], strides = [1, 1]} : vector<16x128xf32> to vector<1x128xf32>
    %18 = vector.extract_strided_slice %12 {offsets = [2, 0], sizes = [1, 32], strides = [1, 1]} : vector<16x128xf32> to vector<1x32xf32>
    %19 = vector.extract_strided_slice %12 {offsets = [2, 32], sizes = [1, 32], strides = [1, 1]} : vector<16x128xf32> to vector<1x32xf32>
    %20 = vector.extract_strided_slice %12 {offsets = [2, 64], sizes = [1, 8], strides = [1, 1]} : vector<16x128xf32> to vector<1x8xf32>
    %21 = vector.extract_strided_slice %12 {offsets = [2, 72], sizes = [1, 3], strides = [1, 1]} : vector<16x128xf32> to vector<1x3xf32>
    %22 = vector.extract_strided_slice %12 {offsets = [2, 75], sizes = [1, 1], strides = [1, 1]} : vector<16x128xf32> to vector<1x1xf32>
    %23 = vector.extract_strided_slice %12 {offsets = [4, 0], sizes = [4, 32], strides = [1, 1]} : vector<16x128xf32> to vector<4x32xf32>
    %24 = vector.extract_strided_slice %12 {offsets = [8, 0], sizes = [8, 3], strides = [1, 1]} : vector<16x128xf32> to vector<8x3xf32>
    %25 = vector.extract_strided_slice %12 {offsets = [8, 32], sizes = [4, 3], strides = [1, 1]} : vector<16x128xf32> to vector<4x3xf32>
    %c0_8 = arith.constant 0 : index
    %c0_9 = arith.constant 0 : index
    %26 = vector.load %arg4[%c0_8, %c0_9] : memref<6x32xf32, #tpu.memory_space<vmem>>, vector<6x32xf32>
    %27 = vector.extract_strided_slice %26 {offsets = [0, 0], sizes = [2, 32], strides = [1, 1]} : vector<6x32xf32> to vector<2x32xf32>
    %28 = vector.extract_strided_slice %26 {offsets = [2, 0], sizes = [2, 32], strides = [1, 1]} : vector<6x32xf32> to vector<2x32xf32>
    %29 = vector.extract_strided_slice %26 {offsets = [4, 0], sizes = [2, 4], strides = [1, 1]} : vector<6x32xf32> to vector<2x4xf32>
    %30 = arith.truncf %0 : vector<48x4xf32> to vector<48x4xbf16>
    %31 = arith.truncf %23 : vector<4x32xf32> to vector<4x32xbf16>
    %cst = arith.constant dense<0.000000e+00> : vector<48x32xf32>
    %32 = tpu.matmul %30, %31, %cst {dimension_numbers = #tpu.dot_dimension_numbers<[1], [0], [0], [1], [0, 0, 1, 1], [], []>} : vector<48x4xbf16>, vector<4x32xbf16>, vector<48x32xf32> -> vector<48x32xf32>
    %33 = vector.broadcast %13 : vector<1x32xf32> to vector<48x32xf32>
    %34 = arith.addf %32, %33 : vector<48x32xf32>
    %35 = arith.truncf %34 : vector<48x32xf32> to vector<48x32xbf16>
    %36 = arith.truncf %6 : vector<32x32xf32> to vector<32x32xbf16>
    %cst_10 = arith.constant dense<0.000000e+00> : vector<48x32xf32>
    %37 = tpu.matmul %35, %36, %cst_10 {dimension_numbers = #tpu.dot_dimension_numbers<[1], [0], [0], [1], [0, 0, 1, 1], [], []>} : vector<48x32xbf16>, vector<32x32xbf16>, vector<48x32xf32> -> vector<48x32xf32>
    %38 = arith.truncf %2 : vector<48x48xf32> to vector<48x48xbf16>
    %39 = arith.truncf %37 : vector<48x32xf32> to vector<48x32xbf16>
    %cst_11 = arith.constant dense<0.000000e+00> : vector<48x32xf32>
    %40 = tpu.matmul %38, %39, %cst_11 {dimension_numbers = #tpu.dot_dimension_numbers<[1], [0], [0], [1], [0, 0, 1, 1], [], []>} : vector<48x48xbf16>, vector<48x32xbf16>, vector<48x32xf32> -> vector<48x32xf32>
    %41 = vector.broadcast %14 : vector<1x32xf32> to vector<48x32xf32>
    %42 = arith.addf %40, %41 : vector<48x32xf32>
    %cst_12 = arith.constant 0.000000e+00 : f32
    %43 = vector.broadcast %cst_12 : f32 to vector<48x32xf32>
    %44 = arith.maximumf %42, %43 : vector<48x32xf32>
    %45 = arith.addf %44, %34 : vector<48x32xf32>
    %46 = arith.truncf %45 : vector<48x32xf32> to vector<48x32xbf16>
    %47 = arith.truncf %7 : vector<32x32xf32> to vector<32x32xbf16>
    %cst_13 = arith.constant dense<0.000000e+00> : vector<48x32xf32>
    %48 = tpu.matmul %46, %47, %cst_13 {dimension_numbers = #tpu.dot_dimension_numbers<[1], [0], [0], [1], [0, 0, 1, 1], [], []>} : vector<48x32xbf16>, vector<32x32xbf16>, vector<48x32xf32> -> vector<48x32xf32>
    %49 = arith.truncf %3 : vector<6x48xf32> to vector<6x48xbf16>
    %50 = arith.truncf %48 : vector<48x32xf32> to vector<48x32xbf16>
    %cst_14 = arith.constant dense<0.000000e+00> : vector<6x32xf32>
    %51 = tpu.matmul %49, %50, %cst_14 {dimension_numbers = #tpu.dot_dimension_numbers<[1], [0], [0], [1], [0, 0, 1, 1], [], []>} : vector<6x48xbf16>, vector<48x32xbf16>, vector<6x32xf32> -> vector<6x32xf32>
    %52 = arith.truncf %4 : vector<6x48xf32> to vector<6x48xbf16>
    %53 = arith.truncf %45 : vector<48x32xf32> to vector<48x32xbf16>
    %cst_15 = arith.constant dense<0.000000e+00> : vector<6x32xf32>
    %54 = tpu.matmul %52, %53, %cst_15 {dimension_numbers = #tpu.dot_dimension_numbers<[1], [0], [0], [1], [0, 0, 1, 1], [], []>} : vector<6x48xbf16>, vector<48x32xbf16>, vector<6x32xf32> -> vector<6x32xf32>
    %55 = arith.addf %51, %54 : vector<6x32xf32>
    %56 = vector.broadcast %15 : vector<1x32xf32> to vector<6x32xf32>
    %57 = arith.addf %55, %56 : vector<6x32xf32>
    %58 = arith.truncf %57 : vector<6x32xf32> to vector<6x32xbf16>
    %59 = arith.truncf %10 : vector<32x128xf32> to vector<32x128xbf16>
    %cst_16 = arith.constant dense<0.000000e+00> : vector<6x128xf32>
    %60 = tpu.matmul %58, %59, %cst_16 {dimension_numbers = #tpu.dot_dimension_numbers<[1], [0], [0], [1], [0, 0, 1, 1], [], []>} : vector<6x32xbf16>, vector<32x128xbf16>, vector<6x128xf32> -> vector<6x128xf32>
    %61 = vector.broadcast %17 : vector<1x128xf32> to vector<6x128xf32>
    %62 = arith.addf %60, %61 : vector<6x128xf32>
    %63 = vector.extract_strided_slice %62 {offsets = [0, 0], sizes = [2, 128], strides = [1, 1]} : vector<6x128xf32> to vector<2x128xf32>
    %64 = arith.truncf %27 : vector<2x32xf32> to vector<2x32xbf16>
    %65 = arith.truncf %11 : vector<32x128xf32> to vector<32x128xbf16>
    %cst_17 = arith.constant dense<0.000000e+00> : vector<2x128xf32>
    %66 = tpu.matmul %64, %65, %cst_17 {dimension_numbers = #tpu.dot_dimension_numbers<[1], [0], [0], [1], [0, 0, 1, 1], [], []>} : vector<2x32xbf16>, vector<32x128xbf16>, vector<2x128xf32> -> vector<2x128xf32>
    %67 = arith.addf %63, %66 : vector<2x128xf32>
    %68 = vector.extract_strided_slice %67 {offsets = [0, 0], sizes = [2, 32], strides = [1, 1]} : vector<2x128xf32> to vector<2x32xf32>
    %69 = arith.negf %68 : vector<2x32xf32>
    %70 = math.exp %69 : vector<2x32xf32>
    %cst_18 = arith.constant 1.000000e+00 : f32
    %71 = vector.broadcast %cst_18 : f32 to vector<2x32xf32>
    %72 = arith.addf %71, %70 : vector<2x32xf32>
    %73 = arith.divf %71, %72 : vector<2x32xf32>
    %74 = vector.extract_strided_slice %67 {offsets = [0, 32], sizes = [2, 32], strides = [1, 1]} : vector<2x128xf32> to vector<2x32xf32>
    %75 = arith.negf %74 : vector<2x32xf32>
    %76 = math.exp %75 : vector<2x32xf32>
    %cst_19 = arith.constant 1.000000e+00 : f32
    %77 = vector.broadcast %cst_19 : f32 to vector<2x32xf32>
    %78 = arith.addf %77, %76 : vector<2x32xf32>
    %79 = arith.divf %77, %78 : vector<2x32xf32>
    %80 = vector.extract_strided_slice %67 {offsets = [0, 64], sizes = [2, 32], strides = [1, 1]} : vector<2x128xf32> to vector<2x32xf32>
    %81 = math.tanh %80 : vector<2x32xf32>
    %82 = vector.extract_strided_slice %67 {offsets = [0, 96], sizes = [2, 32], strides = [1, 1]} : vector<2x128xf32> to vector<2x32xf32>
    %83 = arith.negf %82 : vector<2x32xf32>
    %84 = math.exp %83 : vector<2x32xf32>
    %cst_20 = arith.constant 1.000000e+00 : f32
    %85 = vector.broadcast %cst_20 : f32 to vector<2x32xf32>
    %86 = arith.addf %85, %84 : vector<2x32xf32>
    %87 = arith.divf %85, %86 : vector<2x32xf32>
    %88 = arith.mulf %79, %28 : vector<2x32xf32>
    %89 = arith.mulf %73, %81 : vector<2x32xf32>
    %90 = arith.addf %88, %89 : vector<2x32xf32>
    %91 = math.tanh %90 : vector<2x32xf32>
    %92 = arith.mulf %87, %91 : vector<2x32xf32>
    %93 = vector.extract_strided_slice %62 {offsets = [2, 0], sizes = [2, 128], strides = [1, 1]} : vector<6x128xf32> to vector<2x128xf32>
    %94 = arith.truncf %92 : vector<2x32xf32> to vector<2x32xbf16>
    %95 = arith.truncf %11 : vector<32x128xf32> to vector<32x128xbf16>
    %cst_21 = arith.constant dense<0.000000e+00> : vector<2x128xf32>
    %96 = tpu.matmul %94, %95, %cst_21 {dimension_numbers = #tpu.dot_dimension_numbers<[1], [0], [0], [1], [0, 0, 1, 1], [], []>} : vector<2x32xbf16>, vector<32x128xbf16>, vector<2x128xf32> -> vector<2x128xf32>
    %97 = arith.addf %93, %96 : vector<2x128xf32>
    %98 = vector.extract_strided_slice %97 {offsets = [0, 0], sizes = [2, 32], strides = [1, 1]} : vector<2x128xf32> to vector<2x32xf32>
    %99 = arith.negf %98 : vector<2x32xf32>
    %100 = math.exp %99 : vector<2x32xf32>
    %cst_22 = arith.constant 1.000000e+00 : f32
    %101 = vector.broadcast %cst_22 : f32 to vector<2x32xf32>
    %102 = arith.addf %101, %100 : vector<2x32xf32>
    %103 = arith.divf %101, %102 : vector<2x32xf32>
    %104 = vector.extract_strided_slice %97 {offsets = [0, 32], sizes = [2, 32], strides = [1, 1]} : vector<2x128xf32> to vector<2x32xf32>
    %105 = arith.negf %104 : vector<2x32xf32>
    %106 = math.exp %105 : vector<2x32xf32>
    %cst_23 = arith.constant 1.000000e+00 : f32
    %107 = vector.broadcast %cst_23 : f32 to vector<2x32xf32>
    %108 = arith.addf %107, %106 : vector<2x32xf32>
    %109 = arith.divf %107, %108 : vector<2x32xf32>
    %110 = vector.extract_strided_slice %97 {offsets = [0, 64], sizes = [2, 32], strides = [1, 1]} : vector<2x128xf32> to vector<2x32xf32>
    %111 = math.tanh %110 : vector<2x32xf32>
    %112 = vector.extract_strided_slice %97 {offsets = [0, 96], sizes = [2, 32], strides = [1, 1]} : vector<2x128xf32> to vector<2x32xf32>
    %113 = arith.negf %112 : vector<2x32xf32>
    %114 = math.exp %113 : vector<2x32xf32>
    %cst_24 = arith.constant 1.000000e+00 : f32
    %115 = vector.broadcast %cst_24 : f32 to vector<2x32xf32>
    %116 = arith.addf %115, %114 : vector<2x32xf32>
    %117 = arith.divf %115, %116 : vector<2x32xf32>
    %118 = arith.mulf %109, %90 : vector<2x32xf32>
    %119 = arith.mulf %103, %111 : vector<2x32xf32>
    %120 = arith.addf %118, %119 : vector<2x32xf32>
    %121 = math.tanh %120 : vector<2x32xf32>
    %122 = arith.mulf %117, %121 : vector<2x32xf32>
    %123 = vector.extract_strided_slice %62 {offsets = [4, 0], sizes = [2, 128], strides = [1, 1]} : vector<6x128xf32> to vector<2x128xf32>
    %124 = arith.truncf %122 : vector<2x32xf32> to vector<2x32xbf16>
    %125 = arith.truncf %11 : vector<32x128xf32> to vector<32x128xbf16>
    %cst_25 = arith.constant dense<0.000000e+00> : vector<2x128xf32>
    %126 = tpu.matmul %124, %125, %cst_25 {dimension_numbers = #tpu.dot_dimension_numbers<[1], [0], [0], [1], [0, 0, 1, 1], [], []>} : vector<2x32xbf16>, vector<32x128xbf16>, vector<2x128xf32> -> vector<2x128xf32>
    %127 = arith.addf %123, %126 : vector<2x128xf32>
    %128 = vector.extract_strided_slice %127 {offsets = [0, 0], sizes = [2, 32], strides = [1, 1]} : vector<2x128xf32> to vector<2x32xf32>
    %129 = arith.negf %128 : vector<2x32xf32>
    %130 = math.exp %129 : vector<2x32xf32>
    %cst_26 = arith.constant 1.000000e+00 : f32
    %131 = vector.broadcast %cst_26 : f32 to vector<2x32xf32>
    %132 = arith.addf %131, %130 : vector<2x32xf32>
    %133 = arith.divf %131, %132 : vector<2x32xf32>
    %134 = vector.extract_strided_slice %127 {offsets = [0, 32], sizes = [2, 32], strides = [1, 1]} : vector<2x128xf32> to vector<2x32xf32>
    %135 = arith.negf %134 : vector<2x32xf32>
    %136 = math.exp %135 : vector<2x32xf32>
    %cst_27 = arith.constant 1.000000e+00 : f32
    %137 = vector.broadcast %cst_27 : f32 to vector<2x32xf32>
    %138 = arith.addf %137, %136 : vector<2x32xf32>
    %139 = arith.divf %137, %138 : vector<2x32xf32>
    %140 = vector.extract_strided_slice %127 {offsets = [0, 64], sizes = [2, 32], strides = [1, 1]} : vector<2x128xf32> to vector<2x32xf32>
    %141 = math.tanh %140 : vector<2x32xf32>
    %142 = vector.extract_strided_slice %127 {offsets = [0, 96], sizes = [2, 32], strides = [1, 1]} : vector<2x128xf32> to vector<2x32xf32>
    %143 = arith.negf %142 : vector<2x32xf32>
    %144 = math.exp %143 : vector<2x32xf32>
    %cst_28 = arith.constant 1.000000e+00 : f32
    %145 = vector.broadcast %cst_28 : f32 to vector<2x32xf32>
    %146 = arith.addf %145, %144 : vector<2x32xf32>
    %147 = arith.divf %145, %146 : vector<2x32xf32>
    %148 = arith.mulf %139, %120 : vector<2x32xf32>
    %149 = arith.mulf %133, %141 : vector<2x32xf32>
    %150 = arith.addf %148, %149 : vector<2x32xf32>
    %151 = math.tanh %150 : vector<2x32xf32>
    %152 = arith.mulf %147, %151 : vector<2x32xf32>
    %153 = tpu.concatenate %92, %122, %152 in 0 : vector<2x32xf32>, vector<2x32xf32>, vector<2x32xf32> -> vector<6x32xf32>
    %154 = arith.truncf %153 : vector<6x32xf32> to vector<6x32xbf16>
    %155 = arith.truncf %8 : vector<32x32xf32> to vector<32x32xbf16>
    %cst_29 = arith.constant dense<0.000000e+00> : vector<6x32xf32>
    %156 = tpu.matmul %154, %155, %cst_29 {dimension_numbers = #tpu.dot_dimension_numbers<[1], [0], [0], [1], [0, 0, 1, 1], [], []>} : vector<6x32xbf16>, vector<32x32xbf16>, vector<6x32xf32> -> vector<6x32xf32>
    %157 = vector.broadcast %16 : vector<1x32xf32> to vector<6x32xf32>
    %158 = arith.addf %156, %157 : vector<6x32xf32>
    %159 = math.tanh %158 : vector<6x32xf32>
    %160 = vector.broadcast %19 : vector<1x32xf32> to vector<2x32xf32>
    %161 = arith.mulf %152, %160 : vector<2x32xf32>
    %cst_30 = arith.constant dense<0.000000e+00> : vector<2xf32>
    %162 = vector.multi_reduction <add>, %161, %cst_30 [1] : vector<2x32xf32> to vector<2xf32>
    %163 = vector.shape_cast %162 : vector<2xf32> to vector<2x1xf32>
    %164 = vector.broadcast %22 : vector<1x1xf32> to vector<2x1xf32>
    %165 = arith.addf %163, %164 : vector<2x1xf32>
    %166 = vector.broadcast %18 : vector<1x32xf32> to vector<6x32xf32>
    %167 = arith.mulf %159, %166 : vector<6x32xf32>
    %cst_31 = arith.constant dense<0.000000e+00> : vector<6xf32>
    %168 = vector.multi_reduction <add>, %167, %cst_31 [1] : vector<6x32xf32> to vector<6xf32>
    %169 = vector.shape_cast %168 : vector<6xf32> to vector<6x1xf32>
    %170 = vector.extract_strided_slice %169 {offsets = [0, 0], sizes = [2, 1], strides = [1, 1]} : vector<6x1xf32> to vector<2x1xf32>
    %171 = vector.extract_strided_slice %169 {offsets = [2, 0], sizes = [2, 1], strides = [1, 1]} : vector<6x1xf32> to vector<2x1xf32>
    %172 = vector.extract_strided_slice %169 {offsets = [4, 0], sizes = [2, 1], strides = [1, 1]} : vector<6x1xf32> to vector<2x1xf32>
    %173 = tpu.concatenate %170, %171, %172 in 1 : vector<2x1xf32>, vector<2x1xf32>, vector<2x1xf32> -> vector<2x3xf32>
    %174 = vector.broadcast %165 : vector<2x1xf32> to vector<2x3xf32>
    %175 = arith.addf %173, %174 : vector<2x3xf32>
    %cst_32 = arith.constant dense<0xFF800000> : vector<2xf32>
    %176 = vector.multi_reduction <maximumf>, %175, %cst_32 [1] : vector<2x3xf32> to vector<2xf32>
    %177 = vector.shape_cast %176 : vector<2xf32> to vector<2x1xf32>
    %178 = vector.broadcast %177 : vector<2x1xf32> to vector<2x3xf32>
    %179 = arith.subf %175, %178 : vector<2x3xf32>
    %180 = math.exp %179 : vector<2x3xf32>
    %cst_33 = arith.constant dense<0.000000e+00> : vector<2xf32>
    %181 = vector.multi_reduction <add>, %180, %cst_33 [1] : vector<2x3xf32> to vector<2xf32>
    %182 = vector.shape_cast %181 : vector<2xf32> to vector<2x1xf32>
    %183 = vector.broadcast %182 : vector<2x1xf32> to vector<2x3xf32>
    %184 = arith.divf %180, %183 : vector<2x3xf32>
    %185 = vector.extract_strided_slice %184 {offsets = [0, 0], sizes = [2, 1], strides = [1, 1]} : vector<2x3xf32> to vector<2x1xf32>
    %186 = vector.extract_strided_slice %159 {offsets = [0, 0], sizes = [2, 32], strides = [1, 1]} : vector<6x32xf32> to vector<2x32xf32>
    %187 = vector.broadcast %185 : vector<2x1xf32> to vector<2x32xf32>
    %188 = arith.mulf %187, %186 : vector<2x32xf32>
    %189 = vector.extract_strided_slice %184 {offsets = [0, 1], sizes = [2, 1], strides = [1, 1]} : vector<2x3xf32> to vector<2x1xf32>
    %190 = vector.extract_strided_slice %159 {offsets = [2, 0], sizes = [2, 32], strides = [1, 1]} : vector<6x32xf32> to vector<2x32xf32>
    %191 = vector.broadcast %189 : vector<2x1xf32> to vector<2x32xf32>
    %192 = arith.mulf %191, %190 : vector<2x32xf32>
    %193 = arith.addf %188, %192 : vector<2x32xf32>
    %194 = vector.extract_strided_slice %184 {offsets = [0, 2], sizes = [2, 1], strides = [1, 1]} : vector<2x3xf32> to vector<2x1xf32>
    %195 = vector.extract_strided_slice %159 {offsets = [4, 0], sizes = [2, 32], strides = [1, 1]} : vector<6x32xf32> to vector<2x32xf32>
    %196 = vector.broadcast %194 : vector<2x1xf32> to vector<2x32xf32>
    %197 = arith.mulf %196, %195 : vector<2x32xf32>
    %198 = arith.addf %193, %197 : vector<2x32xf32>
    %cst_34 = arith.constant dense<0.000000e+00> : vector<2x8xf32>
    %199 = tpu.matmul %198, %9, %cst_34 {dimension_numbers = #tpu.dot_dimension_numbers<[1], [0], [0], [1], [0, 0, 1, 1], [], []>} : vector<2x32xf32>, vector<32x8xf32>, vector<2x8xf32> -> vector<2x8xf32>
    %200 = vector.broadcast %20 : vector<1x8xf32> to vector<2x8xf32>
    %201 = arith.addf %199, %200 : vector<2x8xf32>
    %cst_35 = arith.constant 0.000000e+00 : f32
    %202 = vector.broadcast %cst_35 : f32 to vector<2x8xf32>
    %203 = arith.maximumf %201, %202 : vector<2x8xf32>
    %cst_36 = arith.constant dense<0.000000e+00> : vector<2x3xf32>
    %204 = tpu.matmul %203, %24, %cst_36 {dimension_numbers = #tpu.dot_dimension_numbers<[1], [0], [0], [1], [0, 0, 1, 1], [], []>} : vector<2x8xf32>, vector<8x3xf32>, vector<2x3xf32> -> vector<2x3xf32>
    %cst_37 = arith.constant dense<0.000000e+00> : vector<2x3xf32>
    %205 = tpu.matmul %29, %25, %cst_37 {dimension_numbers = #tpu.dot_dimension_numbers<[1], [0], [0], [1], [0, 0, 1, 1], [], []>} : vector<2x4xf32>, vector<4x3xf32>, vector<2x3xf32> -> vector<2x3xf32>
    %206 = arith.addf %204, %205 : vector<2x3xf32>
    %207 = vector.broadcast %21 : vector<1x3xf32> to vector<2x3xf32>
    %208 = arith.addf %206, %207 : vector<2x3xf32>
    %cst_38 = arith.constant 0.000000e+00 : f32
    %209 = vector.broadcast %cst_38 : f32 to vector<2x122xf32>
    %210 = tpu.concatenate %184, %208, %209 in 1 : vector<2x3xf32>, vector<2x3xf32>, vector<2x122xf32> -> vector<2x128xf32>
    %c0_39 = arith.constant 0 : index
    %c0_40 = arith.constant 0 : index
    %211 = vector.load %arg5[%c0_39, %c0_40] : memref<2x128xf32, #tpu.memory_space<vmem>>, vector<2x128xf32>
    tpu.vector_store %arg5[%c0_39, %c0_40], %210 {strides = array<i32>} : memref<2x128xf32, #tpu.memory_space<vmem>>, vector<2x128xf32>,
    return
  }
  func.func @transform_0(%arg0: i32) -> (i32, i32) {
    %c0_i32 = arith.constant 0 : i32
    %c0_i32_0 = arith.constant 0 : i32
    %c0_i32_1 = arith.constant 0 : i32
    return %c0_i32, %c0_i32_0 : i32, i32
  }
  func.func @transform_1(%arg0: i32) -> (i32, i32) {
    %c0_i32 = arith.constant 0 : i32
    %c0_i32_0 = arith.constant 0 : i32
    %c0_i32_1 = arith.constant 0 : i32
    return %c0_i32, %c0_i32_0 : i32, i32
  }
  func.func @transform_2(%arg0: i32) -> (i32, i32) {
    %c0_i32 = arith.constant 0 : i32
    %c0_i32_0 = arith.constant 0 : i32
    %c0_i32_1 = arith.constant 0 : i32
    return %c0_i32, %c0_i32_0 : i32, i32
  }
  func.func @transform_3(%arg0: i32) -> (i32, i32) {
    %c0_i32 = arith.constant 0 : i32
    %c0_i32_0 = arith.constant 0 : i32
    %c0_i32_1 = arith.constant 0 : i32
    return %c0_i32, %c0_i32_0 : i32, i32
  }
  func.func @transform_4(%arg0: i32) -> (i32, i32) {
    %c0_i32 = arith.constant 0 : i32
    %c0_i32_0 = arith.constant 0 : i32
    %c0_i32_1 = arith.constant 0 : i32
    return %c0_i32, %c0_i32_0 : i32, i32
  }
}

</mosaic_0001>

<llo_original>
// kernel: tpu_custom_call.1
$region0: #{tpu_custom_call.1}
  #allocation0 [shape = 'u32[]', space=smem, size = 0x4, offset = 0x4, fixed_abs, tag = 'smem constant byte address 0x4 - core index']
  #allocation1 [shape = 'u32[144,128]{1,0:T(1,128)}', space=vmem, size = 0x12000, scoped, tag = 'internal scratch']
  %s0 = inlined_call_operand.vmem [shape: f32[48,4], index: 0, kind: input, shape index: {}]
  %s1 = inlined_call_operand.vmem [shape: f32[60,48], index: 1, kind: input, shape index: {}]
  %s2 = inlined_call_operand.vmem [shape: f32[112,128], index: 2, kind: input, shape index: {}]
  %s3 = inlined_call_operand.vmem [shape: f32[6,32], index: 3, kind: input, shape index: {}]
  %s4 = inlined_call_operand.hbm [shape: f32[2,128], index: 4, kind: output, shape index: {}]
  %s5 = sld [smem:[#allocation0]]
  $region26: #{tpu_custom_call.1} parent=0
    _
  %s7 = ssub.s32 1, %s5
  %s8 = scalar_select 0, %s7, %s5
  $region1: #{tpu_custom_call.1} parent=0
    #allocation2 [shape = 'u8[1024]{0}', space=vmem, size = 0x400, scoped, tag = 'output window, operand 0, single buffered']
    #allocation3 [shape = 's32[1]{0}', space=sflag, size = 0x4, scoped, tag = 'scoped memory for tpu_custom_call.1']
    %9 = vsyncpa [#allocation3], 0
    // Predicated region
    $region2: #{tpu_custom_call.1} parent=1 // pred_check
      _
    $region3: #{tpu_custom_call.1} parent=1 // pred_check_branch
      %11 = sbr.rel (0) target = $region5
    $region4: #{tpu_custom_call.1} parent=1 // pred_region
      _
    $region5: #{tpu_custom_call.1} parent=1 // pred_fallthru
      _
    // Predicated region
    $region6: #{tpu_custom_call.1} parent=1 // pred_check
      _
    $region7: #{tpu_custom_call.1} parent=1 // pred_check_branch
      %13 = sbr.rel (0) target = $region9
    $region8: #{tpu_custom_call.1} parent=1 // pred_region
      _
    $region9: #{tpu_custom_call.1} parent=1 // pred_fallthru
      _
    // Predicated region
    $region10: #{tpu_custom_call.1} parent=1 // pred_check
      _
    $region11: #{tpu_custom_call.1} parent=1 // pred_check_branch
      %15 = sbr.rel (0) target = $region13
    $region12: #{tpu_custom_call.1} parent=1 // pred_region
      _
    $region13: #{tpu_custom_call.1} parent=1 // pred_fallthru
      _
    // Predicated region
    $region14: #{tpu_custom_call.1} parent=1 // pred_check
      _
    $region15: #{tpu_custom_call.1} parent=1 // pred_check_branch
      %17 = sbr.rel (0) target = $region17
    $region16: #{tpu_custom_call.1} parent=1 // pred_region
      _
    $region17: #{tpu_custom_call.1} parent=1 // pred_fallthru
      _
    %v19 = vld [vmem:[%s0] sm:$0xff]
    %v20 = vld [vmem:[%s0 + $0x8] sm:$0xff]
    %v21 = vld [vmem:[%s0 + $0x10] sm:$0xff]
    %v22 = vld [vmem:[%s0 + $0x18] sm:$0xff]
    %v23 = vld [vmem:[%s0 + $0x20] sm:$0xff]
    %v24 = vld [vmem:[%s0 + $0x28] sm:$0xff]
    %v25 = vld [vmem:[%s1] sm:$0xff]
    %v26 = vld [vmem:[%s1 + $0x8] sm:$0xff]
    %v27 = vld [vmem:[%s1 + $0x10] sm:$0xff]
    %v28 = vld [vmem:[%s1 + $0x18] sm:$0xff]
    %v29 = vld [vmem:[%s1 + $0x20] sm:$0xff]
    %v30 = vld [vmem:[%s1 + $0x28] sm:$0xff]
    %v31 = vld [vmem:[%s1 + $0x30] sm:$0xff]
    %v32 = vld [vmem:[%s1 + $0x38] sm:$0xf]
    %v33 = vld [vmem:[%s2] sm:$0xff]
    %v34 = vld [vmem:[%s2 + $0x8] sm:$0xff]
    %v35 = vld [vmem:[%s2 + $0x10] sm:$0xff]
    %v36 = vld [vmem:[%s2 + $0x18] sm:$0xff]
    %v37 = vld [vmem:[%s2 + $0x20] sm:$0xff]
    %v38 = vld [vmem:[%s2 + $0x28] sm:$0xff]
    %v39 = vld [vmem:[%s2 + $0x30] sm:$0xff]
    %v40 = vld [vmem:[%s2 + $0x38] sm:$0xff]
    %v41 = vld [vmem:[%s2 + $0x40] sm:$0xff]
    %v42 = vld [vmem:[%s2 + $0x48] sm:$0xff]
    %v43 = vld [vmem:[%s2 + $0x50] sm:$0xff]
    %v44 = vld [vmem:[%s2 + $0x58] sm:$0xff]
    %v45 = vld [vmem:[%s2 + $0x60] sm:$0xff]
    %v46 = vld [vmem:[%s2 + $0x68] sm:$0xff]
    %v47 = vld [vmem:[%s3] sm:$0x3f]
    %v48 = vpack.c.bf16 %v20, %v19
    %v49 = vpack.c.bf16 %v22, %v21
    %v50 = vpack.c.bf16 %v24, %v23
    %v51 = vpack.c.bf16 %v45, %v45
    %v52 = vlaneseq
    %v53 = vshrl.u32 %v52, 7
    %v54 = vsub.s32 0, %v53
    %v55 = vrot.slane %v45, %v54
    %v57 = vrot.slane %v51, 2
    %vm58 = vcmask 31744
    %v60 = vsel %vm58, %v48, 0
    %v63 = vsel %vm58, %v49, 0
    %v66 = vsel %vm58, %v50, 0
    %vm68 = vcmask 1041408
    %v70 = vsel %vm68, %v57, 0
    %72 = vmatprep.subr.bf16.mxu0 0
    %73 = vmatpush1.bf16.msra.mxu0 0
    %74 = vmatprep.subr.bf16.mxu0 0
    %75 = vmatpush1.bf16.msra.mxu0 0
    %76 = vmatprep.subr.bf16.mxu0 0
    %77 = vmatpush1.bf16.msra.mxu0 0
    %78 = vmatprep.subr.bf16.mxu0 0
    %79 = vmatpush1.bf16.msra.mxu0 0
    %80 = vmatprep.subr.bf16.mxu0 0
    %81 = vmatpush1.bf16.msra.mxu0 0
    %82 = vmatprep.subr.bf16.mxu0 0
    %83 = vmatpush1.bf16.msra.mxu0 0
    %84 = vmatprep.subr.bf16.mxu0 0
    %85 = vmatpush1.bf16.msra.mxu0 0
    %86 = vmatprep.subr.bf16.mxu0 0
    %87 = vmatpush1.bf16.msra.mxu0 %v70
    %88 = vmatprep.subr.bf16.mxu0 0
    %89 = vmatpush2.bf16.msra.mxu0 0
    %90 = vmatprep.subr.bf16.mxu0 0
    %91 = vmatpush2.bf16.msra.mxu0 0
    %92 = vmatprep.subr.bf16.mxu0 0
    %93 = vmatpush2.bf16.msra.mxu0 0
    %94 = vmatprep.subr.bf16.mxu0 0
    %95 = vmatpush2.bf16.msra.mxu0 0
    %96 = vmatprep.subr.bf16.mxu0 0
    %97 = vmatpush2.bf16.msra.mxu0 0
    %98 = vmatprep.subr.bf16.mxu0 0
    %99 = vmatpush2.bf16.msra.mxu0 0
    %100 = vmatprep.subr.bf16.mxu0 0
    %101 = vmatpush2.bf16.msra.mxu0 0
    %102 = vmatprep.subr.bf16.mxu0 0
    %103 = vmatpush2.bf16.msra.mxu0 0
    %104 = vmatprep.mubr.bf16.mxu0 0
    %105 = vmatmul.mubr.bf16.gmra.mxu0 %v60
    %v106 = vpop.f32.mrf.mxu0
    %v107 = vadd.f32 %v55, %v106
    %v108 = vpop.f32.mrf.mxu0
    %v109 = vpop.f32.mrf.mxu0
    %v110 = vadd.f32 %v55, %v109
    %v111 = vpop.f32.mrf.mxu0
    %112 = vmatprep.mubr.bf16.mxu0 0
    %113 = vmatmul.mubr.bf16.gmra.mxu0 %v63
    %v114 = vpop.f32.mrf.mxu0
    %v115 = vadd.f32 %v55, %v114
    %v116 = vpop.f32.mrf.mxu0
    %v117 = vpop.f32.mrf.mxu0
    %v118 = vadd.f32 %v55, %v117
    %v119 = vpop.f32.mrf.mxu0
    %120 = vmatprep.mubr.bf16.mxu0 0
    %121 = vmatmul.mubr.bf16.gmra.mxu0 %v66
    %v122 = vpop.f32.mrf.mxu0
    %v123 = vadd.f32 %v55, %v122
    %v124 = vpop.f32.mrf.mxu0
    %v125 = vpop.f32.mrf.mxu0
    %v126 = vadd.f32 %v55, %v125
    %v127 = vpop.f32.mrf.mxu0
    %128 = vdwg.mxu0
    %v129 = vpack.c.bf16 %v110, %v107
    %v130 = vpack.c.bf16 %v118, %v115
    %v131 = vpack.c.bf16 %v126, %v123
    %v132 = vpack.c.bf16 %v34, %v33
    %v133 = vpack.c.bf16 %v36, %v35
    %vm134 = vcmask 261120
    %v136 = vsel %vm134, %v129, 0
    %v139 = vsel %vm134, %v130, 0
    %v142 = vsel %vm134, %v131, 0
    %144 = vmatprep.subr.bf16.mxu0 0
    %145 = vmatpush1.bf16.msra.mxu0 0
    %146 = vmatprep.subr.bf16.mxu0 0
    %147 = vmatpush1.bf16.msra.mxu0 0
    %148 = vmatprep.subr.bf16.mxu0 0
    %149 = vmatpush1.bf16.msra.mxu0 0
    %150 = vmatprep.subr.bf16.mxu0 0
    %151 = vmatpush1.bf16.msra.mxu0 0
    %152 = vmatprep.subr.bf16.mxu0 0
    %153 = vmatpush1.bf16.msra.mxu0 0
    %154 = vmatprep.subr.bf16.mxu0 0
    %155 = vmatpush1.bf16.msra.mxu0 0
    %156 = vmatprep.subr.bf16.mxu0 0
    %157 = vmatpush1.bf16.msra.mxu0 %v133
    %158 = vmatprep.subr.bf16.mxu0 0
    %159 = vmatpush1.bf16.msra.mxu0 %v132
    %160 = vmatprep.subr.bf16.mxu0 0
    %161 = vmatpush2.bf16.msra.mxu0 0
    %162 = vmatprep.subr.bf16.mxu0 0
    %163 = vmatpush2.bf16.msra.mxu0 0
    %164 = vmatprep.subr.bf16.mxu0 0
    %165 = vmatpush2.bf16.msra.mxu0 0
    %166 = vmatprep.subr.bf16.mxu0 0
    %167 = vmatpush2.bf16.msra.mxu0 0
    %168 = vmatprep.subr.bf16.mxu0 0
    %169 = vmatpush2.bf16.msra.mxu0 0
    %170 = vmatprep.subr.bf16.mxu0 0
    %171 = vmatpush2.bf16.msra.mxu0 0
    %172 = vmatprep.subr.bf16.mxu0 0
    %173 = vmatpush2.bf16.msra.mxu0 0
    %174 = vmatprep.subr.bf16.mxu0 0
    %175 = vmatpush2.bf16.msra.mxu0 0
    %176 = vmatprep.mubr.bf16.mxu0 0
    %177 = vmatmul.mubr.bf16.gmra.mxu0 %v136
    %v178 = vpop.f32.mrf.mxu0
    %v179 = vadd.f32 0.0, %v178
    %v180 = vpop.f32.mrf.mxu0
    %v181 = vpop.f32.mrf.mxu0
    %v182 = vadd.f32 0.0, %v181
    %v183 = vpop.f32.mrf.mxu0
    %184 = vmatprep.mubr.bf16.mxu0 0
    %185 = vmatmul.mubr.bf16.gmra.mxu0 %v139
    %v186 = vpop.f32.mrf.mxu0
    %v187 = vadd.f32 0.0, %v186
    %v188 = vpop.f32.mrf.mxu0
    %v189 = vpop.f32.mrf.mxu0
    %v190 = vadd.f32 0.0, %v189
    %v191 = vpop.f32.mrf.mxu0
    %192 = vmatprep.mubr.bf16.mxu0 0
    %193 = vmatmul.mubr.bf16.gmra.mxu0 %v142
    %v194 = vpop.f32.mrf.mxu0
    %v195 = vadd.f32 0.0, %v194
    %v196 = vpop.f32.mrf.mxu0
    %v197 = vpop.f32.mrf.mxu0
    %v198 = vadd.f32 0.0, %v197
    %v199 = vpop.f32.mrf.mxu0
    %200 = vdwg.mxu0
    %v201 = vpack.c.bf16 %v26, %v25
    %v202 = vpack.c.bf16 %v28, %v27
    %v203 = vpack.c.bf16 %v30, %v29
    %v204 = vpack.c.bf16 %v182, %v179
    %v205 = vpack.c.bf16 %v190, %v187
    %v206 = vpack.c.bf16 %v198, %v195
    %208 = vrot.lane.b32.xlu0 %v55, 96
    %v209 = vpop.permute.xlu0 %208
    %vm211 = vcmask 392192
    %v213 = vsel %vm211, %v201, 0
    %v216 = vsel %vm211, %v202, 0
    %v219 = vsel %vm211, %v203, 0
    %221 = vmatprep.subr.bf16.mxu0 0
    %222 = vmatpush1.bf16.msra.mxu0 0
    %223 = vmatprep.subr.bf16.mxu0 0
    %224 = vmatpush1.bf16.msra.mxu0 0
    %225 = vmatprep.subr.bf16.mxu0 0
    %226 = vmatpush1.bf16.msra.mxu0 0
    %227 = vmatprep.subr.bf16.mxu0 0
    %228 = vmatpush1.bf16.msra.mxu0 0
    %229 = vmatprep.subr.bf16.mxu0 0
    %230 = vmatpush1.bf16.msra.mxu0 0
    %231 = vmatprep.subr.bf16.mxu0 0
    %232 = vmatpush1.bf16.msra.mxu0 %v206
    %233 = vmatprep.subr.bf16.mxu0 0
    %234 = vmatpush1.bf16.msra.mxu0 %v205
    %235 = vmatprep.subr.bf16.mxu0 0
    %236 = vmatpush1.bf16.msra.mxu0 %v204
    %237 = vmatprep.subr.bf16.mxu0 0
    %238 = vmatpush2.bf16.msra.mxu0 0
    %239 = vmatprep.subr.bf16.mxu0 0
    %240 = vmatpush2.bf16.msra.mxu0 0
    %241 = vmatprep.subr.bf16.mxu0 0
    %242 = vmatpush2.bf16.msra.mxu0 0
    %243 = vmatprep.subr.bf16.mxu0 0
    %244 = vmatpush2.bf16.msra.mxu0 0
    %245 = vmatprep.subr.bf16.mxu0 0
    %246 = vmatpush2.bf16.msra.mxu0 0
    %247 = vmatprep.subr.bf16.mxu0 0
    %248 = vmatpush2.bf16.msra.mxu0 0
    %249 = vmatprep.subr.bf16.mxu0 0
    %250 = vmatpush2.bf16.msra.mxu0 0
    %251 = vmatprep.subr.bf16.mxu0 0
    %252 = vmatpush2.bf16.msra.mxu0 0
    %253 = vmatprep.mubr.bf16.mxu0 0
    %254 = vmatmul.mubr.bf16.gmra.mxu0 %v213
    %v255 = vpop.f32.mrf.mxu0
    %v256 = vadd.f32 %v209, %v255
    %v257 = vpop.f32.mrf.mxu0
    %v258 = vpop.f32.mrf.mxu0
    %v259 = vadd.f32 %v209, %v258
    %v260 = vpop.f32.mrf.mxu0
    %261 = vmatprep.mubr.bf16.mxu0 0
    %262 = vmatmul.mubr.bf16.gmra.mxu0 %v216
    %v263 = vpop.f32.mrf.mxu0
    %v264 = vadd.f32 %v209, %v263
    %v265 = vpop.f32.mrf.mxu0
    %v266 = vpop.f32.mrf.mxu0
    %v267 = vadd.f32 %v209, %v266
    %v268 = vpop.f32.mrf.mxu0
    %269 = vmatprep.mubr.bf16.mxu0 0
    %270 = vmatmul.mubr.bf16.gmra.mxu0 %v219
    %v271 = vpop.f32.mrf.mxu0
    %v272 = vadd.f32 %v209, %v271
    %v273 = vpop.f32.mrf.mxu0
    %v274 = vpop.f32.mrf.mxu0
    %v275 = vadd.f32 %v209, %v274
    %v276 = vpop.f32.mrf.mxu0
    %277 = vdwg.mxu0
    %v278 = vmax.f32 %v256, 0.0
    %v279 = vmax.f32 %v259, 0.0
    %v280 = vmax.f32 %v264, 0.0
    %v281 = vmax.f32 %v267, 0.0
    %v282 = vmax.f32 %v272, 0.0
    %v283 = vmax.f32 %v275, 0.0
    %v284 = vadd.f32 %v278, %v107
    %v285 = vadd.f32 %v279, %v110
    %v286 = vadd.f32 %v280, %v115
    %v287 = vadd.f32 %v281, %v118
    %v288 = vadd.f32 %v282, %v123
    %v289 = vadd.f32 %v283, %v126
    %v290 = vpack.c.bf16 %v285, %v284
    %v291 = vpack.c.bf16 %v287, %v286
    %v292 = vpack.c.bf16 %v289, %v288
    %295 = vrot.lane.b32.xlu0 %v132, 96
    %v296 = vpop.permute.xlu0 %295
    %297 = vrot.lane.b32.xlu0 %v133, 96
    %v298 = vpop.permute.xlu0 %297
    %v302 = vsel %vm134, %v290, 0
    %v305 = vsel %vm134, %v291, 0
    %v308 = vsel %vm134, %v292, 0
    %310 = vmatprep.subr.bf16.mxu0 0
    %311 = vmatpush1.bf16.msra.mxu0 0
    %312 = vmatprep.subr.bf16.mxu0 0
    %313 = vmatpush1.bf16.msra.mxu0 0
    %314 = vmatprep.subr.bf16.mxu0 0
    %315 = vmatpush1.bf16.msra.mxu0 0
    %316 = vmatprep.subr.bf16.mxu0 0
    %317 = vmatpush1.bf16.msra.mxu0 0
    %318 = vmatprep.subr.bf16.mxu0 0
    %319 = vmatpush1.bf16.msra.mxu0 0
    %320 = vmatprep.subr.bf16.mxu0 0
    %321 = vmatpush1.bf16.msra.mxu0 0
    %322 = vmatprep.subr.bf16.mxu0 0
    %323 = vmatpush1.bf16.msra.mxu0 %v298
    %324 = vmatprep.subr.bf16.mxu0 0
    %325 = vmatpush1.bf16.msra.mxu0 %v296
    %326 = vmatprep.subr.bf16.mxu0 0
    %327 = vmatpush2.bf16.msra.mxu0 0
    %328 = vmatprep.subr.bf16.mxu0 0
    %329 = vmatpush2.bf16.msra.mxu0 0
    %330 = vmatprep.subr.bf16.mxu0 0
    %331 = vmatpush2.bf16.msra.mxu0 0
    %332 = vmatprep.subr.bf16.mxu0 0
    %333 = vmatpush2.bf16.msra.mxu0 0
    %334 = vmatprep.subr.bf16.mxu0 0
    %335 = vmatpush2.bf16.msra.mxu0 0
    %336 = vmatprep.subr.bf16.mxu0 0
    %337 = vmatpush2.bf16.msra.mxu0 0
    %338 = vmatprep.subr.bf16.mxu0 0
    %339 = vmatpush2.bf16.msra.mxu0 0
    %340 = vmatprep.subr.bf16.mxu0 0
    %341 = vmatpush2.bf16.msra.mxu0 0
    %342 = vmatprep.mubr.bf16.mxu0 0
    %343 = vmatmul.mubr.bf16.gmra.mxu0 %v302
    %v344 = vpop.f32.mrf.mxu0
    %v345 = vadd.f32 0.0, %v344
    %v346 = vpop.f32.mrf.mxu0
    %v347 = vpop.f32.mrf.mxu0
    %v348 = vadd.f32 0.0, %v347
    %v349 = vpop.f32.mrf.mxu0
    %350 = vmatprep.mubr.bf16.mxu0 0
    %351 = vmatmul.mubr.bf16.gmra.mxu0 %v305
    %v352 = vpop.f32.mrf.mxu0
    %v353 = vadd.f32 0.0, %v352
    %v354 = vpop.f32.mrf.mxu0
    %v355 = vpop.f32.mrf.mxu0
    %v356 = vadd.f32 0.0, %v355
    %v357 = vpop.f32.mrf.mxu0
    %358 = vmatprep.mubr.bf16.mxu0 0
    %359 = vmatmul.mubr.bf16.gmra.mxu0 %v308
    %v360 = vpop.f32.mrf.mxu0
    %v361 = vadd.f32 0.0, %v360
    %v362 = vpop.f32.mrf.mxu0
    %v363 = vpop.f32.mrf.mxu0
    %v364 = vadd.f32 0.0, %v363
    %v365 = vpop.f32.mrf.mxu0
    %366 = vdwg.mxu0
    %v367 = vpack.c.bf16 %v31, %v31
    %v368 = vpack.c.bf16 %v348, %v345
    %v369 = vpack.c.bf16 %v356, %v353
    %v370 = vpack.c.bf16 %v364, %v361
    %v371 = vpack.c.bf16 %v32, %v31
    %v373 = vrot.slane %v371, 3
    %v375 = vsel %vm211, %v373, 0
    %377 = vmatprep.subr.bf16.mxu0 0
    %378 = vmatpush1.bf16.msra.mxu0 0
    %379 = vmatprep.subr.bf16.mxu0 0
    %380 = vmatpush1.bf16.msra.mxu0 0
    %381 = vmatprep.subr.bf16.mxu0 0
    %382 = vmatpush1.bf16.msra.mxu0 0
    %383 = vmatprep.subr.bf16.mxu0 0
    %384 = vmatpush1.bf16.msra.mxu0 0
    %385 = vmatprep.subr.bf16.mxu0 0
    %386 = vmatpush1.bf16.msra.mxu0 0
    %387 = vmatprep.subr.bf16.mxu0 0
    %388 = vmatpush1.bf16.msra.mxu0 %v292
    %389 = vmatprep.subr.bf16.mxu0 0
    %390 = vmatpush1.bf16.msra.mxu0 %v291
    %391 = vmatprep.subr.bf16.mxu0 0
    %392 = vmatpush1.bf16.msra.mxu0 %v290
    %393 = vmatprep.subr.bf16.mxu0 0
    %394 = vmatpush2.bf16.msra.mxu0 0
    %395 = vmatprep.subr.bf16.mxu0 0
    %396 = vmatpush2.bf16.msra.mxu0 0
    %397 = vmatprep.subr.bf16.mxu0 0
    %398 = vmatpush2.bf16.msra.mxu0 0
    %399 = vmatprep.subr.bf16.mxu0 0
    %400 = vmatpush2.bf16.msra.mxu0 0
    %401 = vmatprep.subr.bf16.mxu0 0
    %402 = vmatpush2.bf16.msra.mxu0 0
    %403 = vmatprep.subr.bf16.mxu0 0
    %404 = vmatpush2.bf16.msra.mxu0 0
    %405 = vmatprep.subr.bf16.mxu0 0
    %406 = vmatpush2.bf16.msra.mxu0 0
    %407 = vmatprep.subr.bf16.mxu0 0
    %408 = vmatpush2.bf16.msra.mxu0 0
    %409 = vmatprep.mubr.bf16.mxu0 0
    %410 = vmatmul.mubr.bf16.gmra.mxu0 %v375
    %v411 = vpop.f32.mrf.mxu0
    %v412 = vadd.f32 0.0, %v411
    %v413 = vpop.f32.mrf.mxu0
    %v414 = vpop.f32.mrf.mxu0
    %v415 = vpop.f32.mrf.mxu0
    %416 = vdwg.mxu0
    %v418 = vsel %vm211, %v367, 0
    %420 = vmatprep.subr.bf16.mxu0 0
    %421 = vmatpush1.bf16.msra.mxu0 0
    %422 = vmatprep.subr.bf16.mxu0 0
    %423 = vmatpush1.bf16.msra.mxu0 0
    %424 = vmatprep.subr.bf16.mxu0 0
    %425 = vmatpush1.bf16.msra.mxu0 0
    %426 = vmatprep.subr.bf16.mxu0 0
    %427 = vmatpush1.bf16.msra.mxu0 0
    %428 = vmatprep.subr.bf16.mxu0 0
    %429 = vmatpush1.bf16.msra.mxu0 0
    %430 = vmatprep.subr.bf16.mxu0 0
    %431 = vmatpush1.bf16.msra.mxu0 %v370
    %432 = vmatprep.subr.bf16.mxu0 0
    %433 = vmatpush1.bf16.msra.mxu0 %v369
    %434 = vmatprep.subr.bf16.mxu0 0
    %435 = vmatpush1.bf16.msra.mxu0 %v368
    %436 = vmatprep.subr.bf16.mxu0 0
    %437 = vmatpush2.bf16.msra.mxu0 0
    %438 = vmatprep.subr.bf16.mxu0 0
    %439 = vmatpush2.bf16.msra.mxu0 0
    %440 = vmatprep.subr.bf16.mxu0 0
    %441 = vmatpush2.bf16.msra.mxu0 0
    %442 = vmatprep.subr.bf16.mxu0 0
    %443 = vmatpush2.bf16.msra.mxu0 0
    %444 = vmatprep.subr.bf16.mxu0 0
    %445 = vmatpush2.bf16.msra.mxu0 0
    %446 = vmatprep.subr.bf16.mxu0 0
    %447 = vmatpush2.bf16.msra.mxu0 0
    %448 = vmatprep.subr.bf16.mxu0 0
    %449 = vmatpush2.bf16.msra.mxu0 0
    %450 = vmatprep.subr.bf16.mxu0 0
    %451 = vmatpush2.bf16.msra.mxu0 0
    %452 = vmatprep.mubr.bf16.mxu0 0
    %453 = vmatmul.mubr.bf16.gmra.mxu0 %v418
    %v454 = vpop.f32.mrf.mxu0
    %v455 = vadd.f32 %v412, %v454
    %v456 = vpop.f32.mrf.mxu0
    %v457 = vpop.f32.mrf.mxu0
    %v458 = vpop.f32.mrf.mxu0
    %459 = vdwg.mxu0
    %460 = vrot.lane.b32.xlu0 %v55, 64
    %v461 = vpop.permute.xlu0 %460
    %v463 = vadd.f32 %v455, %v461
    %v464 = vpack.c.bf16 %v463, %v463
    %v465 = vpack.c.bf16 %v38, %v37
    %v466 = vpack.c.bf16 %v40, %v39
    %v467 = vlaneseq
    %v468 = vshrl.u32 %v467, 7
    %v469 = vsub.s32 1, %v468
    %v470 = vrot.slane %v45, %v469
    %v472 = vsel %vm134, %v464, 0
    %474 = vmatprep.subr.bf16.mxu0 0
    %475 = vmatpush1.bf16.msra.mxu0 0
    %476 = vmatprep.subr.bf16.mxu0 0
    %477 = vmatpush1.bf16.msra.mxu0 0
    %478 = vmatprep.subr.bf16.mxu0 0
    %479 = vmatpush1.bf16.msra.mxu0 0
    %480 = vmatprep.subr.bf16.mxu0 0
    %481 = vmatpush1.bf16.msra.mxu0 0
    %482 = vmatprep.subr.bf16.mxu0 0
    %483 = vmatpush1.bf16.msra.mxu0 0
    %484 = vmatprep.subr.bf16.mxu0 0
    %485 = vmatpush1.bf16.msra.mxu0 0
    %486 = vmatprep.subr.bf16.mxu0 0
    %487 = vmatpush1.bf16.msra.mxu0 %v466
    %488 = vmatprep.subr.bf16.mxu0 0
    %489 = vmatpush1.bf16.msra.mxu0 %v465
    %490 = vmatprep.subr.bf16.mxu0 0
    %491 = vmatpush2.bf16.msra.mxu0 0
    %492 = vmatprep.subr.bf16.mxu0 0
    %493 = vmatpush2.bf16.msra.mxu0 0
    %494 = vmatprep.subr.bf16.mxu0 0
    %495 = vmatpush2.bf16.msra.mxu0 0
    %496 = vmatprep.subr.bf16.mxu0 0
    %497 = vmatpush2.bf16.msra.mxu0 0
    %498 = vmatprep.subr.bf16.mxu0 0
    %499 = vmatpush2.bf16.msra.mxu0 0
    %500 = vmatprep.subr.bf16.mxu0 0
    %501 = vmatpush2.bf16.msra.mxu0 0
    %502 = vmatprep.subr.bf16.mxu0 0
    %503 = vmatpush2.bf16.msra.mxu0 0
    %504 = vmatprep.subr.bf16.mxu0 0
    %505 = vmatpush2.bf16.msra.mxu0 0
    %506 = vmatprep.mubr.bf16.mxu0 0
    %507 = vmatmul.mubr.bf16.gmra.mxu0 %v472
    %v508 = vpop.f32.mrf.mxu0
    %v509 = vadd.f32 %v470, %v508
    %v510 = vpop.f32.mrf.mxu0
    %v511 = vpop.f32.mrf.mxu0
    %v512 = vpop.f32.mrf.mxu0
    %513 = vdwg.mxu0
    %v514 = vpack.c.bf16 %v47, %v47
    %v515 = vpack.c.bf16 %v42, %v41
    %v516 = vpack.c.bf16 %v44, %v43
    %v518 = vsel %vm134, %v514, 0
    %520 = vmatprep.subr.bf16.mxu0 0
    %521 = vmatpush1.bf16.msra.mxu0 0
    %522 = vmatprep.subr.bf16.mxu0 0
    %523 = vmatpush1.bf16.msra.mxu0 0
    %524 = vmatprep.subr.bf16.mxu0 0
    %525 = vmatpush1.bf16.msra.mxu0 0
    %526 = vmatprep.subr.bf16.mxu0 0
    %527 = vmatpush1.bf16.msra.mxu0 0
    %528 = vmatprep.subr.bf16.mxu0 0
    %529 = vmatpush1.bf16.msra.mxu0 0
    %530 = vmatprep.subr.bf16.mxu0 0
    %531 = vmatpush1.bf16.msra.mxu0 0
    %532 = vmatprep.subr.bf16.mxu0 0
    %533 = vmatpush1.bf16.msra.mxu0 %v516
    %534 = vmatprep.subr.bf16.mxu0 0
    %535 = vmatpush1.bf16.msra.mxu0 %v515
    %536 = vmatprep.subr.bf16.mxu0 0
    %537 = vmatpush2.bf16.msra.mxu0 0
    %538 = vmatprep.subr.bf16.mxu0 0
    %539 = vmatpush2.bf16.msra.mxu0 0
    %540 = vmatprep.subr.bf16.mxu0 0
    %541 = vmatpush2.bf16.msra.mxu0 0
    %542 = vmatprep.subr.bf16.mxu0 0
    %543 = vmatpush2.bf16.msra.mxu0 0
    %544 = vmatprep.subr.bf16.mxu0 0
    %545 = vmatpush2.bf16.msra.mxu0 0
    %546 = vmatprep.subr.bf16.mxu0 0
    %547 = vmatpush2.bf16.msra.mxu0 0
    %548 = vmatprep.subr.bf16.mxu0 0
    %549 = vmatpush2.bf16.msra.mxu0 0
    %550 = vmatprep.subr.bf16.mxu0 0
    %551 = vmatpush2.bf16.msra.mxu0 0
    %552 = vmatprep.mubr.bf16.mxu0 0
    %553 = vmatmul.mubr.bf16.gmra.mxu0 %v518
    %v554 = vpop.f32.mrf.mxu0
    %v555 = vadd.f32 0.0, %v554
    %v556 = vpop.f32.mrf.mxu0
    %v557 = vpop.f32.mrf.mxu0
    %v558 = vpop.f32.mrf.mxu0
    %559 = vdwg.mxu0
    %v560 = vadd.f32 %v509, %v555
    %v561 = vxor.u32 %v560, 2147483648
    %v562 = vmul.f32 %v561, 1.442695
    %v563 = vpow.pop %v562
    %v564 = vadd.f32 %v563, 1.0
    %v565 = vrcp.pop %v564
    %v566 = vmul.f32 1.0, %v565
    %v567 = vtanh.pop %v560
    %v569 = vrot.slane %v47, 2
    %570 = vrot.lane.b32.xlu0 %v569, 32
    %v571 = vpop.permute.xlu0 %570
    %v573 = vmul.f32 %v566, %v571
    %575 = vrot.lane.b32.xlu0 %v567, 64
    %v576 = vpop.permute.xlu0 %575
    %v578 = vmul.f32 %v566, %v576
    %580 = vrot.lane.b32.xlu0 %v578, 32
    %v581 = vpop.permute.xlu0 %580
    %v583 = vadd.f32 %v573, %v581
    %v584 = vtanh.pop %v583
    %586 = vrot.lane.b32.xlu0 %v584, 64
    %v587 = vpop.permute.xlu0 %586
    %v589 = vmul.f32 %v566, %v587
    %v590 = vpack.c.bf16 %v589, %v589
    %592 = vrot.lane.b32.xlu0 %v590, 32
    %v593 = vpop.permute.xlu0 %592
    %v595 = vsel %vm134, %v593, 0
    %597 = vmatprep.subr.bf16.mxu0 0
    %598 = vmatpush1.bf16.msra.mxu0 0
    %599 = vmatprep.subr.bf16.mxu0 0
    %600 = vmatpush1.bf16.msra.mxu0 0
    %601 = vmatprep.subr.bf16.mxu0 0
    %602 = vmatpush1.bf16.msra.mxu0 0
    %603 = vmatprep.subr.bf16.mxu0 0
    %604 = vmatpush1.bf16.msra.mxu0 0
    %605 = vmatprep.subr.bf16.mxu0 0
    %606 = vmatpush1.bf16.msra.mxu0 0
    %607 = vmatprep.subr.bf16.mxu0 0
    %608 = vmatpush1.bf16.msra.mxu0 0
    %609 = vmatprep.subr.bf16.mxu0 0
    %610 = vmatpush1.bf16.msra.mxu0 %v516
    %611 = vmatprep.subr.bf16.mxu0 0
    %612 = vmatpush1.bf16.msra.mxu0 %v515
    %613 = vmatprep.subr.bf16.mxu0 0
    %614 = vmatpush2.bf16.msra.mxu0 0
    %615 = vmatprep.subr.bf16.mxu0 0
    %616 = vmatpush2.bf16.msra.mxu0 0
    %617 = vmatprep.subr.bf16.mxu0 0
    %618 = vmatpush2.bf16.msra.mxu0 0
    %619 = vmatprep.subr.bf16.mxu0 0
    %620 = vmatpush2.bf16.msra.mxu0 0
    %621 = vmatprep.subr.bf16.mxu0 0
    %622 = vmatpush2.bf16.msra.mxu0 0
    %623 = vmatprep.subr.bf16.mxu0 0
    %624 = vmatpush2.bf16.msra.mxu0 0
    %625 = vmatprep.subr.bf16.mxu0 0
    %626 = vmatpush2.bf16.msra.mxu0 0
    %627 = vmatprep.subr.bf16.mxu0 0
    %628 = vmatpush2.bf16.msra.mxu0 0
    %629 = vmatprep.mubr.bf16.mxu0 0
    %630 = vmatmul.mubr.bf16.gmra.mxu0 %v595
    %v631 = vpop.f32.mrf.mxu0
    %v632 = vadd.f32 0.0, %v631
    %v633 = vpop.f32.mrf.mxu0
    %v634 = vpop.f32.mrf.mxu0
    %v635 = vpop.f32.mrf.mxu0
    %636 = vdwg.mxu0
    %v638 = vrot.slane %v632, 6
    %v640 = vadd.f32 %v509, %v638
    %v641 = vxor.u32 %v640, 2147483648
    %v642 = vmul.f32 %v641, 1.442695
    %v643 = vpow.pop %v642
    %v644 = vadd.f32 %v643, 1.0
    %v645 = vrcp.pop %v644
    %v646 = vmul.f32 1.0, %v645
    %v647 = vtanh.pop %v640
    %v649 = vrot.slane %v583, 6
    %v651 = vmul.f32 %v646, %v649
    %653 = vrot.lane.b32.xlu0 %v647, 64
    %v654 = vpop.permute.xlu0 %653
    %v656 = vmul.f32 %v646, %v654
    %658 = vrot.lane.b32.xlu0 %v656, 32
    %v659 = vpop.permute.xlu0 %658
    %v661 = vadd.f32 %v651, %v659
    %v662 = vtanh.pop %v661
    %664 = vrot.lane.b32.xlu0 %v662, 64
    %v665 = vpop.permute.xlu0 %664
    %v667 = vmul.f32 %v646, %v665
    %v668 = vpack.c.bf16 %v667, %v667
    %v670 = vrot.slane %v668, 1
    %671 = vrot.lane.b32.xlu0 %v670, 32
    %v672 = vpop.permute.xlu0 %671
    %v674 = vsel %vm134, %v672, 0
    %676 = vmatprep.subr.bf16.mxu0 0
    %677 = vmatpush1.bf16.msra.mxu0 0
    %678 = vmatprep.subr.bf16.mxu0 0
    %679 = vmatpush1.bf16.msra.mxu0 0
    %680 = vmatprep.subr.bf16.mxu0 0
    %681 = vmatpush1.bf16.msra.mxu0 0
    %682 = vmatprep.subr.bf16.mxu0 0
    %683 = vmatpush1.bf16.msra.mxu0 0
    %684 = vmatprep.subr.bf16.mxu0 0
    %685 = vmatpush1.bf16.msra.mxu0 0
    %686 = vmatprep.subr.bf16.mxu0 0
    %687 = vmatpush1.bf16.msra.mxu0 0
    %688 = vmatprep.subr.bf16.mxu0 0
    %689 = vmatpush1.bf16.msra.mxu0 %v516
    %690 = vmatprep.subr.bf16.mxu0 0
    %691 = vmatpush1.bf16.msra.mxu0 %v515
    %692 = vmatprep.subr.bf16.mxu0 0
    %693 = vmatpush2.bf16.msra.mxu0 0
    %694 = vmatprep.subr.bf16.mxu0 0
    %695 = vmatpush2.bf16.msra.mxu0 0
    %696 = vmatprep.subr.bf16.mxu0 0
    %697 = vmatpush2.bf16.msra.mxu0 0
    %698 = vmatprep.subr.bf16.mxu0 0
    %699 = vmatpush2.bf16.msra.mxu0 0
    %700 = vmatprep.subr.bf16.mxu0 0
    %701 = vmatpush2.bf16.msra.mxu0 0
    %702 = vmatprep.subr.bf16.mxu0 0
    %703 = vmatpush2.bf16.msra.mxu0 0
    %704 = vmatprep.subr.bf16.mxu0 0
    %705 = vmatpush2.bf16.msra.mxu0 0
    %706 = vmatprep.subr.bf16.mxu0 0
    %707 = vmatpush2.bf16.msra.mxu0 0
    %708 = vmatprep.mubr.bf16.mxu0 0
    %709 = vmatmul.mubr.bf16.gmra.mxu0 %v674
    %v710 = vpop.f32.mrf.mxu0
    %v711 = vadd.f32 0.0, %v710
    %v712 = vpop.f32.mrf.mxu0
    %v713 = vpop.f32.mrf.mxu0
    %v714 = vpop.f32.mrf.mxu0
    %715 = vdwg.mxu0
    %v717 = vrot.slane %v711, 4
    %v719 = vadd.f32 %v509, %v717
    %v720 = vxor.u32 %v719, 2147483648
    %v721 = vmul.f32 %v720, 1.442695
    %v722 = vpow.pop %v721
    %v723 = vadd.f32 %v722, 1.0
    %v724 = vrcp.pop %v723
    %v725 = vmul.f32 1.0, %v724
    %v726 = vtanh.pop %v719
    %v728 = vrot.slane %v661, 6
    %v730 = vmul.f32 %v725, %v728
    %732 = vrot.lane.b32.xlu0 %v726, 64
    %v733 = vpop.permute.xlu0 %732
    %v735 = vmul.f32 %v725, %v733
    %737 = vrot.lane.b32.xlu0 %v735, 32
    %v738 = vpop.permute.xlu0 %737
    %v740 = vadd.f32 %v730, %v738
    %v741 = vtanh.pop %v740
    %743 = vrot.lane.b32.xlu0 %v741, 64
    %v744 = vpop.permute.xlu0 %743
    %v746 = vmul.f32 %v725, %v744
    %v747 = vsel %vm68, %v589, %v667
    %vm748 = vcmask 1043456
    %v749 = vsel %vm748, %v747, %v746
    %v750 = vpack.c.bf16 %v749, %v749
    %752 = vrot.lane.b32.xlu0 %v750, 32
    %v753 = vpop.permute.xlu0 %752
    %754 = vrot.lane.b32.xlu0 %v132, 64
    %v755 = vpop.permute.xlu0 %754
    %756 = vrot.lane.b32.xlu0 %v133, 64
    %v757 = vpop.permute.xlu0 %756
    %760 = vrot.lane.b32.xlu0 %v55, 32
    %v761 = vpop.permute.xlu0 %760
    %v764 = vsel %vm134, %v753, 0
    %766 = vmatprep.subr.bf16.mxu0 0
    %767 = vmatpush1.bf16.msra.mxu0 0
    %768 = vmatprep.subr.bf16.mxu0 0
    %769 = vmatpush1.bf16.msra.mxu0 0
    %770 = vmatprep.subr.bf16.mxu0 0
    %771 = vmatpush1.bf16.msra.mxu0 0
    %772 = vmatprep.subr.bf16.mxu0 0
    %773 = vmatpush1.bf16.msra.mxu0 0
    %774 = vmatprep.subr.bf16.mxu0 0
    %775 = vmatpush1.bf16.msra.mxu0 0
    %776 = vmatprep.subr.bf16.mxu0 0
    %777 = vmatpush1.bf16.msra.mxu0 0
    %778 = vmatprep.subr.bf16.mxu0 0
    %779 = vmatpush1.bf16.msra.mxu0 %v757
    %780 = vmatprep.subr.bf16.mxu0 0
    %781 = vmatpush1.bf16.msra.mxu0 %v755
    %782 = vmatprep.subr.bf16.mxu0 0
    %783 = vmatpush2.bf16.msra.mxu0 0
    %784 = vmatprep.subr.bf16.mxu0 0
    %785 = vmatpush2.bf16.msra.mxu0 0
    %786 = vmatprep.subr.bf16.mxu0 0
    %787 = vmatpush2.bf16.msra.mxu0 0
    %788 = vmatprep.subr.bf16.mxu0 0
    %789 = vmatpush2.bf16.msra.mxu0 0
    %790 = vmatprep.subr.bf16.mxu0 0
    %791 = vmatpush2.bf16.msra.mxu0 0
    %792 = vmatprep.subr.bf16.mxu0 0
    %793 = vmatpush2.bf16.msra.mxu0 0
    %794 = vmatprep.subr.bf16.mxu0 0
    %795 = vmatpush2.bf16.msra.mxu0 0
    %796 = vmatprep.subr.bf16.mxu0 0
    %797 = vmatpush2.bf16.msra.mxu0 0
    %798 = vmatprep.mubr.bf16.mxu0 0
    %799 = vmatmul.mubr.bf16.gmra.mxu0 %v764
    %v800 = vpop.f32.mrf.mxu0
    %v801 = vadd.f32 %v761, %v800
    %v802 = vpop.f32.mrf.mxu0
    %v803 = vpop.f32.mrf.mxu0
    %v804 = vpop.f32.mrf.mxu0
    %805 = vdwg.mxu0
    %v806 = vtanh.pop %v801
    %v807 = vlaneseq
    %v808 = vshrl.u32 %v807, 7
    %v809 = vsub.s32 2, %v808
    %v810 = vrot.slane %v45, %v809
    %812 = vrot.lane.b32.xlu0 %v810, 64
    %v813 = vpop.permute.xlu0 %812
    %v815 = vmul.f32 %v746, %v813
    %817 = vrot.lane.b32.xlu0 %v815, 32
    %v818 = vpop.permute.xlu0 %817
    %vm820 = vcmask 259076
    %v821 = vsel %vm820, %v818, 0.0
    %822 = vadd.xlane.f32.xlu0 %v821
    %v823 = vpop.xlane.xlu0 %822
    %v824 = vadd.f32 %v823, %v810
    %v825 = vmul.f32 %v806, %v810
    %vm826 = vcmask 259072
    %v827 = vsel %vm826, %v825, 0.0
    %828 = vadd.xlane.f32.xlu0 %v827
    %v829 = vpop.xlane.xlu0 %828
    %v831 = vrot.slane %v829, 2
    %v833 = vrot.slane %v829, 4
    %vm835 = vcmask 7168
    %v836 = vsel %vm835, %v829, %v831
    %vm837 = vcmask 15360
    %v838 = vsel %vm837, %v836, %v833
    %840 = vset.pattern.permute.xlu0 75
    %841 = vperm.xlu0 %840, %v824
    %v842 = vpop.permute.xlu0 %841
    %v843 = vrot.slane %v842, 4
    %v845 = vadd.f32 %v838, %v843
    %vm846 = vcmask 17408
    %v847 = vsel %vm846, %v845, -inf
    %848 = vmax.xlane.f32.xlu0 %v847
    %v849 = vpop.xlane.xlu0 %848
    %v850 = vsub.f32 %v845, %v849
    %v851 = vmul.f32 %v850, 1.442695
    %v852 = vpow.pop %v851
    %v853 = vsel %vm846, %v852, 0.0
    %854 = vadd.xlane.f32.xlu0 %v853
    %v855 = vpop.xlane.xlu0 %854
    %v856 = vrcp.pop %v855
    %v857 = vmul.f32 %v852, %v856
    %859 = vset.pattern.permute.xlu0 0
    %860 = vperm.xlu0 %859, %v857
    %v861 = vpop.permute.xlu0 %860
    %v863 = vmul.f32 %v861, %v806
    %864 = vset.pattern.permute.xlu0 1
    %865 = vperm.xlu0 %864, %v857
    %v866 = vpop.permute.xlu0 %865
    %v869 = vrot.slane %v806, 2
    %v871 = vmul.f32 %v866, %v869
    %v872 = vadd.f32 %v863, %v871
    %873 = vset.pattern.permute.xlu0 2
    %874 = vperm.xlu0 %873, %v857
    %v875 = vpop.permute.xlu0 %874
    %v877 = vrot.slane %v806, 4
    %v879 = vmul.f32 %v875, %v877
    %v880 = vadd.f32 %v872, %v879
    %885 = vrot.lane.b32.xlu0 %v33, 32
    %v886 = vpop.permute.xlu0 %885
    %887 = vrot.lane.b32.xlu0 %v34, 32
    %v888 = vpop.permute.xlu0 %887
    %889 = vrot.lane.b32.xlu0 %v35, 32
    %v890 = vpop.permute.xlu0 %889
    %891 = vrot.lane.b32.xlu0 %v36, 32
    %v892 = vpop.permute.xlu0 %891
    %v898 = vsel %vm134, %v880, 0
    %900 = vmatprep.subr.mxu0 0.0
    %901 = vmatpush1.msra.mxu0 0.0
    %902 = vmatprep.subr.mxu0 0.0
    %903 = vmatpush1.msra.mxu0 0.0
    %904 = vmatprep.subr.mxu0 0.0
    %905 = vmatpush1.msra.mxu0 0.0
    %906 = vmatprep.subr.mxu0 0.0
    %907 = vmatpush1.msra.mxu0 0.0
    %908 = vmatprep.subr.mxu0 0.0
    %909 = vmatpush1.msra.mxu0 0.0
    %910 = vmatprep.subr.mxu0 0.0
    %911 = vmatpush1.msra.mxu0 0.0
    %912 = vmatprep.subr.mxu0 0.0
    %913 = vmatpush1.msra.mxu0 0.0
    %914 = vmatprep.subr.mxu0 0.0
    %915 = vmatpush1.msra.mxu0 0.0
    %916 = vmatprep.subr.mxu0 0.0
    %917 = vmatpush1.msra.mxu0 0.0
    %918 = vmatprep.subr.mxu0 0.0
    %919 = vmatpush1.msra.mxu0 0.0
    %920 = vmatprep.subr.mxu0 0.0
    %921 = vmatpush1.msra.mxu0 0.0
    %922 = vmatprep.subr.mxu0 0.0
    %923 = vmatpush1.msra.mxu0 0.0
    %924 = vmatprep.subr.mxu0 0.0
    %925 = vmatpush1.msra.mxu0 %v892
    %926 = vmatprep.subr.mxu0 0.0
    %927 = vmatpush1.msra.mxu0 %v890
    %928 = vmatprep.subr.mxu0 0.0
    %929 = vmatpush1.msra.mxu0 %v888
    %930 = vmatprep.subr.mxu0 0.0
    %931 = vmatpush1.msra.mxu0 %v886
    %932 = vmatprep.subr.mxu0 0.0
    %933 = vmatpush2.msra.mxu0 0.0
    %934 = vmatprep.subr.mxu0 0.0
    %935 = vmatpush2.msra.mxu0 0.0
    %936 = vmatprep.subr.mxu0 0.0
    %937 = vmatpush2.msra.mxu0 0.0
    %938 = vmatprep.subr.mxu0 0.0
    %939 = vmatpush2.msra.mxu0 0.0
    %940 = vmatprep.subr.mxu0 0.0
    %941 = vmatpush2.msra.mxu0 0.0
    %942 = vmatprep.subr.mxu0 0.0
    %943 = vmatpush2.msra.mxu0 0.0
    %944 = vmatprep.subr.mxu0 0.0
    %945 = vmatpush2.msra.mxu0 0.0
    %946 = vmatprep.subr.mxu0 0.0
    %947 = vmatpush2.msra.mxu0 0.0
    %948 = vmatprep.subr.mxu0 0.0
    %949 = vmatpush2.msra.mxu0 0.0
    %950 = vmatprep.subr.mxu0 0.0
    %951 = vmatpush2.msra.mxu0 0.0
    %952 = vmatprep.subr.mxu0 0.0
    %953 = vmatpush2.msra.mxu0 0.0
    %954 = vmatprep.subr.mxu0 0.0
    %955 = vmatpush2.msra.mxu0 0.0
    %956 = vmatprep.subr.mxu0 0.0
    %957 = vmatpush2.msra.mxu0 0.0
    %958 = vmatprep.subr.mxu0 0.0
    %959 = vmatpush2.msra.mxu0 0.0
    %960 = vmatprep.subr.mxu0 0.0
    %961 = vmatpush2.msra.mxu0 0.0
    %962 = vmatprep.subr.mxu0 0.0
    %963 = vmatpush2.msra.mxu0 0.0
    %964 = vmatprep.mubr.f32.mxu0 0.0
    %965 = vmatmul.mubr.f32.gmra.mxu0 %v898
    %v966 = vpop.f32.mrf.mxu0
    %v967 = vadd.f32 %v813, %v966
    %v968 = vpop.f32.mrf.mxu0
    %969 = vdwg.mxu0
    %v970 = vmax.f32 %v967, 0.0
    %v971 = vrot.slane %v47, 4
    %973 = vrot.lane.b32.xlu0 %v46, 96
    %v974 = vpop.permute.xlu0 %973
    %v975 = vsel %vm58, %v971, 0
    %v977 = vsel %vm748, %v974, 0
    %979 = vmatprep.subr.mxu0 0.0
    %980 = vmatpush1.msra.mxu0 0.0
    %981 = vmatprep.subr.mxu0 0.0
    %982 = vmatpush1.msra.mxu0 0.0
    %983 = vmatprep.subr.mxu0 0.0
    %984 = vmatpush1.msra.mxu0 0.0
    %985 = vmatprep.subr.mxu0 0.0
    %986 = vmatpush1.msra.mxu0 0.0
    %987 = vmatprep.subr.mxu0 0.0
    %988 = vmatpush1.msra.mxu0 0.0
    %989 = vmatprep.subr.mxu0 0.0
    %990 = vmatpush1.msra.mxu0 0.0
    %991 = vmatprep.subr.mxu0 0.0
    %992 = vmatpush1.msra.mxu0 0.0
    %993 = vmatprep.subr.mxu0 0.0
    %994 = vmatpush1.msra.mxu0 0.0
    %995 = vmatprep.subr.mxu0 0.0
    %996 = vmatpush1.msra.mxu0 0.0
    %997 = vmatprep.subr.mxu0 0.0
    %998 = vmatpush1.msra.mxu0 0.0
    %999 = vmatprep.subr.mxu0 0.0
    %1000 = vmatpush1.msra.mxu0 0.0
    %1001 = vmatprep.subr.mxu0 0.0
    %1002 = vmatpush1.msra.mxu0 0.0
    %1003 = vmatprep.subr.mxu0 0.0
    %1004 = vmatpush1.msra.mxu0 0.0
    %1005 = vmatprep.subr.mxu0 0.0
    %1006 = vmatpush1.msra.mxu0 0.0
    %1007 = vmatprep.subr.mxu0 0.0
    %1008 = vmatpush1.msra.mxu0 0.0
    %1009 = vmatprep.subr.mxu0 0.0
    %1010 = vmatpush1.msra.mxu0 %v977
    %1011 = vmatprep.subr.mxu0 0.0
    %1012 = vmatpush2.msra.mxu0 0.0
    %1013 = vmatprep.subr.mxu0 0.0
    %1014 = vmatpush2.msra.mxu0 0.0
    %1015 = vmatprep.subr.mxu0 0.0
    %1016 = vmatpush2.msra.mxu0 0.0
    %1017 = vmatprep.subr.mxu0 0.0
    %1018 = vmatpush2.msra.mxu0 0.0
    %1019 = vmatprep.subr.mxu0 0.0
    %1020 = vmatpush2.msra.mxu0 0.0
    %1021 = vmatprep.subr.mxu0 0.0
    %1022 = vmatpush2.msra.mxu0 0.0
    %1023 = vmatprep.subr.mxu0 0.0
    %1024 = vmatpush2.msra.mxu0 0.0
    %1025 = vmatprep.subr.mxu0 0.0
    %1026 = vmatpush2.msra.mxu0 0.0
    %1027 = vmatprep.subr.mxu0 0.0
    %1028 = vmatpush2.msra.mxu0 0.0
    %1029 = vmatprep.subr.mxu0 0.0
    %1030 = vmatpush2.msra.mxu0 0.0
    %1031 = vmatprep.subr.mxu0 0.0
    %1032 = vmatpush2.msra.mxu0 0.0
    %1033 = vmatprep.subr.mxu0 0.0
    %1034 = vmatpush2.msra.mxu0 0.0
    %1035 = vmatprep.subr.mxu0 0.0
    %1036 = vmatpush2.msra.mxu0 0.0
    %1037 = vmatprep.subr.mxu0 0.0
    %1038 = vmatpush2.msra.mxu0 0.0
    %1039 = vmatprep.subr.mxu0 0.0
    %1040 = vmatpush2.msra.mxu0 0.0
    %1041 = vmatprep.subr.mxu0 0.0
    %1042 = vmatpush2.msra.mxu0 0.0
    %1043 = vmatprep.mubr.f32.mxu0 0.0
    %1044 = vmatmul.mubr.f32.gmra.mxu0 %v975
    %v1045 = vpop.f32.mrf.mxu0
    %v1046 = vadd.f32 0.0, %v1045
    %v1047 = vpop.f32.mrf.mxu0
    %1048 = vdwg.mxu0
    %vm1049 = vcmask 64512
    %v1051 = vsel %vm1049, %v970, 0
    %1053 = vmatprep.subr.mxu0 0.0
    %1054 = vmatpush1.msra.mxu0 0.0
    %1055 = vmatprep.subr.mxu0 0.0
    %1056 = vmatpush1.msra.mxu0 0.0
    %1057 = vmatprep.subr.mxu0 0.0
    %1058 = vmatpush1.msra.mxu0 0.0
    %1059 = vmatprep.subr.mxu0 0.0
    %1060 = vmatpush1.msra.mxu0 0.0
    %1061 = vmatprep.subr.mxu0 0.0
    %1062 = vmatpush1.msra.mxu0 0.0
    %1063 = vmatprep.subr.mxu0 0.0
    %1064 = vmatpush1.msra.mxu0 0.0
    %1065 = vmatprep.subr.mxu0 0.0
    %1066 = vmatpush1.msra.mxu0 0.0
    %1067 = vmatprep.subr.mxu0 0.0
    %1068 = vmatpush1.msra.mxu0 0.0
    %1069 = vmatprep.subr.mxu0 0.0
    %1070 = vmatpush1.msra.mxu0 0.0
    %1071 = vmatprep.subr.mxu0 0.0
    %1072 = vmatpush1.msra.mxu0 0.0
    %1073 = vmatprep.subr.mxu0 0.0
    %1074 = vmatpush1.msra.mxu0 0.0
    %1075 = vmatprep.subr.mxu0 0.0
    %1076 = vmatpush1.msra.mxu0 0.0
    %1077 = vmatprep.subr.mxu0 0.0
    %1078 = vmatpush1.msra.mxu0 0.0
    %1079 = vmatprep.subr.mxu0 0.0
    %1080 = vmatpush1.msra.mxu0 0.0
    %1081 = vmatprep.subr.mxu0 0.0
    %1082 = vmatpush1.msra.mxu0 0.0
    %1083 = vmatprep.subr.mxu0 0.0
    %1084 = vmatpush1.msra.mxu0 %v46
    %1085 = vmatprep.subr.mxu0 0.0
    %1086 = vmatpush2.msra.mxu0 0.0
    %1087 = vmatprep.subr.mxu0 0.0
    %1088 = vmatpush2.msra.mxu0 0.0
    %1089 = vmatprep.subr.mxu0 0.0
    %1090 = vmatpush2.msra.mxu0 0.0
    %1091 = vmatprep.subr.mxu0 0.0
    %1092 = vmatpush2.msra.mxu0 0.0
    %1093 = vmatprep.subr.mxu0 0.0
    %1094 = vmatpush2.msra.mxu0 0.0
    %1095 = vmatprep.subr.mxu0 0.0
    %1096 = vmatpush2.msra.mxu0 0.0
    %1097 = vmatprep.subr.mxu0 0.0
    %1098 = vmatpush2.msra.mxu0 0.0
    %1099 = vmatprep.subr.mxu0 0.0
    %1100 = vmatpush2.msra.mxu0 0.0
    %1101 = vmatprep.subr.mxu0 0.0
    %1102 = vmatpush2.msra.mxu0 0.0
    %1103 = vmatprep.subr.mxu0 0.0
    %1104 = vmatpush2.msra.mxu0 0.0
    %1105 = vmatprep.subr.mxu0 0.0
    %1106 = vmatpush2.msra.mxu0 0.0
    %1107 = vmatprep.subr.mxu0 0.0
    %1108 = vmatpush2.msra.mxu0 0.0
    %1109 = vmatprep.subr.mxu0 0.0
    %1110 = vmatpush2.msra.mxu0 0.0
    %1111 = vmatprep.subr.mxu0 0.0
    %1112 = vmatpush2.msra.mxu0 0.0
    %1113 = vmatprep.subr.mxu0 0.0
    %1114 = vmatpush2.msra.mxu0 0.0
    %1115 = vmatprep.subr.mxu0 0.0
    %1116 = vmatpush2.msra.mxu0 0.0
    %1117 = vmatprep.mubr.f32.mxu0 0.0
    %1118 = vmatmul.mubr.f32.gmra.mxu0 %v1051
    %v1119 = vpop.f32.mrf.mxu0
    %v1120 = vadd.f32 %v1046, %v1119
    %v1121 = vpop.f32.mrf.mxu0
    %1122 = vdwg.mxu0
    %1123 = vrot.lane.b32.xlu0 %v810, 56
    %v1124 = vpop.permute.xlu0 %1123
    %v1126 = vadd.f32 %v1120, %v1124
    %1128 = vrot.lane.b32.xlu0 %v1126, 3
    %v1129 = vpop.permute.xlu0 %1128
    %vm1131 = vcmask 23552
    %v1132 = vsel %vm1131, %v857, %v1129
    %vm1133 = vcmask 48128
    %v1134 = vsel %vm1133, %v1132, 0.0
    %1135 = vst [vmem:[#allocation2] sm:$0x3] %v1134
    // Predicated region
    $region18: #{tpu_custom_call.1} parent=1 // pred_check
      _
    $region19: #{tpu_custom_call.1} parent=1 // pred_check_branch
      %1137 = sbr.rel (0) target = $region21
    $region20: #{tpu_custom_call.1} parent=1 // pred_region
      %s1139 = ssub.s32 32, 32
      %1140 = vsyncadd [#allocation3], %s1139
      %s1142 = sshll.u32 [#allocation2], 4
      %s1143 = int_to_ptr.vmem [resolvable:$true] %s1142
      %1145 = dma.vmem_to_hbm [thread:$0]  %s1143, 32, %s4, [#allocation3]
    $region21: #{tpu_custom_call.1} parent=1 // pred_fallthru
      _
    // Predicated region
    $region22: #{tpu_custom_call.1} parent=1 // pred_check
      _
    $region23: #{tpu_custom_call.1} parent=1 // pred_check_branch
      %1147 = sbr.rel (0) target = $region25
    $region24: #{tpu_custom_call.1} parent=1 // pred_region
      %1148 = dma.done [#allocation3], 32
    $region25: #{tpu_custom_call.1} parent=1 // pred_fallthru
      _
    %1149 = vsyncpa [#allocation3], 1

</llo_original>
